<compile_context>
chip_gen: v6e
topology: v6e:2x2x1
jax: 0.10.0
libtpu: 0.0.40
codegen_flags: <defaults>
</compile_context>

<pallas_src>
import functools
import math

import jax
import jax.numpy as jnp
from jax.experimental import pallas as pl
from jax.experimental.pallas import tpu as pltpu


def _round_up(x, m):
    return (x + m - 1) // m * m


def _hw_config():
    """(vmem_limit_bytes, row_tile) per TPU generation.

    v5e / v6e have 128 MiB VMEM per core -> big tiles + ~100 MiB scoped limit.
    v7x has only 64 MiB physical VMEM -> leave headroom (48 MiB) and tile 256.
    """
    vmem_cap = 64 * 1024 * 1024
    try:
        vmem_cap = int(pltpu.get_tpu_info().vmem_capacity_bytes)
    except Exception:  # non-TPU backend / older jax: stay conservative
        pass
    if vmem_cap >= 100 * 1024 * 1024:        # v5e / v6e (128 MiB)
        return 100 * 1024 * 1024, 512
    return 48 * 1024 * 1024, 256             # v7x or unknown


def _compiler_params(vmem_limit_bytes):
    return pltpu.CompilerParams(
        dimension_semantics=("parallel",),
        vmem_limit_bytes=vmem_limit_bytes,
    )


# -----------------------------------------------------------------------------
# erf via Abramowitz & Stegun 7.1.26 (|abs err| < 1.5e-7): keeps the exact-erf
# GELU semantics of the reference well below test tolerance.
# TODO(synk): on v6e/v7x this epilogue is VALU-bound; consider an approx EUP
# reciprocal for the 1/(1+p|x|) term once its accuracy budget is validated.
def _erf(x):
    a1, a2, a3, a4, a5 = (0.254829592, -0.284496736, 1.421413741,
                          -1.453152027, 1.061405429)
    p = 0.3275911
    s = jnp.where(x >= 0.0, 1.0, -1.0)
    ax = jnp.abs(x)
    t = 1.0 / (1.0 + p * ax)
    poly = ((((a5 * t + a4) * t + a3) * t + a2) * t + a1) * t
    return s * (1.0 - poly * jnp.exp(-ax * ax))


def _gelu(x):
    return x * 0.5 * (1.0 + _erf(x * (1.0 / math.sqrt(2.0))))


def _layernorm(x, gamma, beta, eps):
    # Two-pass variance (subtract mean, then square) in f32: safe against
    # cancellation when mean >> std after dense + residual.
    mean = jnp.mean(x, axis=-1, keepdims=True)
    xc = x - mean
    var = jnp.mean(xc * xc, axis=-1, keepdims=True)
    return xc * jax.lax.rsqrt(var + eps) * gamma + beta


# -----------------------------------------------------------------------------
# Kernel A: fused QKV + attention + self-output dense + residual + LayerNorm.
def _attention_block_kernel(x_ref, wqkv_ref, bqkv_ref, wo_ref, bo_ref,
                            g_ref, be_ref, o_ref, *, num_heads, scale, eps,
                            approx_recip):
    cd = wqkv_ref.dtype                       # MXU operand (compute) dtype
    x_res = x_ref[0].astype(jnp.float32)      # (S, H) residual path, f32
    x_op = x_ref[0].astype(cd)
    H = x_op.shape[-1]
    dh = H // num_heads

    # Fused Q/K/V projection: one (S,H) @ (H,3H) MXU op with f32 accumulation.
    qkv = jnp.dot(x_op, wqkv_ref[...], preferred_element_type=jnp.float32)
    qkv = qkv + bqkv_ref[...]
    q = qkv[:, :H] * scale                    # fold 1/sqrt(dh) into Q: O(S*H)
    k = qkv[:, H:2 * H]
    v = qkv[:, 2 * H:]

    # Per-head attention. Static unrolled loop keeps only one head's (S,S)
    # logits live; heads are concatenated lane-dense into (S, H).
    # TODO(synk): attention_mask / head_mask / attention dropout omitted
    # (None / eval mode in this forward path).
    ctx_heads = []
    for h in range(num_heads):
        lo = h * dh
        q_h = q[:, lo:lo + dh].astype(cd)
        k_h = k[:, lo:lo + dh].astype(cd)
        v_h = v[:, lo:lo + dh].astype(cd)
        s_h = jnp.einsum("qd,kd->qk", q_h, k_h,
                         preferred_element_type=jnp.float32)
        m_h = jnp.max(s_h, axis=-1, keepdims=True)
        p_h = jnp.exp(s_h - m_h)              # unnormalised probabilities
        l_h = jnp.sum(p_h, axis=-1, keepdims=True)
        c_h = jnp.dot(p_h.astype(cd), v_h,
                      preferred_element_type=jnp.float32)
        # Deferred softmax normalisation: one O(S*dh) scale after PV.
        inv_l = pl.reciprocal(l_h, approx=True) if approx_recip else 1.0 / l_h
        ctx_heads.append(c_h * inv_l)
    ctx = jnp.concatenate(ctx_heads, axis=-1)          # (S, H), lane-dense

    # Self-output: dense + bias + residual + LayerNorm (f32 statistics).
    y = jnp.dot(ctx.astype(cd), wo_ref[...],
                preferred_element_type=jnp.float32)
    y = y + bo_ref[...] + x_res
    # TODO(synk): hidden dropout omitted (eval-mode identity).
    o_ref[0] = _layernorm(y, g_ref[...], be_ref[...], eps).astype(o_ref.dtype)


def _attention_block(x, wqkv, bqkv, wo, bo, gamma, beta, *, num_heads, eps,
                     vmem_limit, out_dtype):
    B, S, H = x.shape
    scale = 1.0 / math.sqrt(H // num_heads)
    approx_recip = (wqkv.dtype != jnp.float32)   # strict f32 mode stays exact

    rows = pl.BlockSpec((1, S, H), lambda b: (b, 0, 0))
    # Constant-index specs -> weights stay VMEM-resident across the batch grid.
    # TODO(synk): add pipeline_mode=pl.Buffered(1) (single-buffer constant
    # blocks) once verified on the target jax/Mosaic version.
    const = lambda a: pl.BlockSpec(a.shape, lambda b: (0, 0))

    return pl.pallas_call(
        functools.partial(_attention_block_kernel, num_heads=num_heads,
                          scale=scale, eps=eps, approx_recip=approx_recip),
        out_shape=jax.ShapeDtypeStruct((B, S, H), out_dtype),
        grid_spec=pltpu.PrefetchScalarGridSpec(
            num_scalar_prefetch=0,
            grid=(B,),
            in_specs=[rows, const(wqkv), const(bqkv), const(wo), const(bo),
                      const(gamma), const(beta)],
            out_specs=rows,
        ),
        compiler_params=_compiler_params(vmem_limit),
    )(x, wqkv, bqkv, wo, bo, gamma, beta)


# -----------------------------------------------------------------------------
# Kernel B: fused FFN (dense + GELU in VMEM -> dense + residual + LayerNorm).
def _ffn_kernel(x_ref, wi_ref, bi_ref, wo_ref, bo_ref, g_ref, be_ref, o_ref,
                *, eps):
    cd = wi_ref.dtype
    x_res = x_ref[...].astype(jnp.float32)      # (tm, H) residual, f32
    # Intermediate dense + exact-erf GELU; the (tm, I) activation stays in
    # VMEM (fused with the output dense -> no HBM round trip).
    h = jnp.dot(x_ref[...].astype(cd), wi_ref[...],
                preferred_element_type=jnp.float32)
    h = _gelu(h + bi_ref[...])
    # Output dense + bias + residual + LayerNorm.
    y = jnp.dot(h.astype(cd), wo_ref[...], preferred_element_type=jnp.float32)
    y = y + bo_ref[...] + x_res
    # TODO(synk): hidden dropout omitted (eval-mode identity).
    o_ref[...] = _layernorm(y, g_ref[...], be_ref[...], eps).astype(o_ref.dtype)


def _ffn_block(x2d, wi, bi, wo2, bo2, gamma, beta, *, eps, tm, vmem_limit,
               out_dtype):
    M, H = x2d.shape
    # Pick a row tile that is a multiple of 8 and pad M up to a multiple of it
    # (no giant single-block fallback for awkward M).
    tm_eff = min(tm, _round_up(M, 8))
    Mp = _round_up(M, tm_eff)
    if Mp != M:
        x2d = jnp.pad(x2d, ((0, Mp - M), (0, 0)))

    rows = pl.BlockSpec((tm_eff, H), lambda i: (i, 0))
    const = lambda a: pl.BlockSpec(a.shape, lambda i: (0, 0))

    out = pl.pallas_call(
        functools.partial(_ffn_kernel, eps=eps),
        out_shape=jax.ShapeDtypeStruct((Mp, H), out_dtype),
        grid_spec=pltpu.PrefetchScalarGridSpec(
            num_scalar_prefetch=0,
            grid=(Mp // tm_eff,),
            in_specs=[rows, const(wi), const(bi), const(wo2), const(bo2),
                      const(gamma), const(beta)],
            out_specs=rows,
        ),
        compiler_params=_compiler_params(vmem_limit),
    )(x2d, wi, bi, wo2, bo2, gamma, beta)
    return out[:M] if Mp != M else out


# -----------------------------------------------------------------------------
# One-time (model-load) parameter packing: concat QKV, cast matmul weights to
# the compute dtype, keep biases / LN params as (1, N) float32 rows.
def prepare_params(params, compute_dtype=jnp.float32):
    cd = compute_dtype
    row = lambda v: v.reshape(1, -1).astype(jnp.float32)
    return {
        "wqkv": jnp.concatenate([params["wq"], params["wk"], params["wv"]],
                                axis=1).astype(cd),
        "bqkv": jnp.concatenate([params["bq"], params["bk"], params["bv"]]
                                ).reshape(1, -1).astype(jnp.float32),
        "wo": params["wo"].astype(cd), "bo": row(params["bo"]),
        "ln1_g": row(params["ln1_g"]), "ln1_b": row(params["ln1_b"]),
        "wi": params["wi"].astype(cd), "bi": row(params["bi"]),
        "wo2": params["wo2"].astype(cd), "bo2": row(params["bo2"]),
        "ln2_g": row(params["ln2_g"]), "ln2_b": row(params["ln2_b"]),
    }


# -----------------------------------------------------------------------------
# Full RobertaLayer forward.
def roberta_layer(hidden_states, prepared, *, num_heads, eps=1e-12,
                  row_tile=None, vmem_limit_bytes=None):
    """hidden_states: (B, S, H) float32. `prepared` comes from prepare_params."""
    B, S, H = hidden_states.shape
    assert H % num_heads == 0
    auto_vmem, auto_tm = _hw_config()
    vmem_limit = vmem_limit_bytes or auto_vmem
    tm = row_tile or auto_tm

    # -- attention block (QKV + SDPA + self-output dense + residual + LN) ----
    attn_out = _attention_block(
        hidden_states, prepared["wqkv"], prepared["bqkv"],
        prepared["wo"], prepared["bo"], prepared["ln1_g"], prepared["ln1_b"],
        num_heads=num_heads, eps=eps, vmem_limit=vmem_limit,
        out_dtype=hidden_states.dtype)

    # -- fused FFN (dense + GELU -> dense + residual + LN) --------------------
    out2d = _ffn_block(
        attn_out.reshape(B * S, H),
        prepared["wi"], prepared["bi"], prepared["wo2"], prepared["bo2"],
        prepared["ln2_g"], prepared["ln2_b"],
        eps=eps, tm=tm, vmem_limit=vmem_limit, out_dtype=hidden_states.dtype)

    return out2d.reshape(B, S, H)


# -----------------------------------------------------------------------------
# Pure-JAX reference (eval-mode RobertaLayer, exact erf GELU).
def _reference(x, p, *, num_heads, eps):
    B, S, H = x.shape
    dh = H // num_heads

    def heads(t):
        return t.reshape(B, S, num_heads, dh).transpose(0, 2, 1, 3)

    q = heads(x @ p["wq"] + p["bq"])
    k = heads(x @ p["wk"] + p["bk"])
    v = heads(x @ p["wv"] + p["bv"])
    s = jnp.einsum("bhqd,bhkd->bhqk", q, k) / math.sqrt(dh)
    a = jax.nn.softmax(s, axis=-1)
    ctx = jnp.einsum("bhqk,bhkd->bhqd", a, v)
    ctx = ctx.transpose(0, 2, 1, 3).reshape(B, S, H)

    def ln(t, g, b):
        mu = t.mean(-1, keepdims=True)
        var = ((t - mu) ** 2).mean(-1, keepdims=True)
        return (t - mu) / jnp.sqrt(var + eps) * g + b

    attn_out = ln(ctx @ p["wo"] + p["bo"] + x, p["ln1_g"], p["ln1_b"])
    h = attn_out @ p["wi"] + p["bi"]
    h = h * 0.5 * (1.0 + jax.lax.erf(h / math.sqrt(2.0)))
    return ln(h @ p["wo2"] + p["bo2"] + attn_out, p["ln2_g"], p["ln2_b"])


if __name__ == "__main__":
    # Small RoBERTa-like config: hidden=32, 4 heads (dh=8), intermediate=128.
    B, S, H, nH, I = 2, 8, 32, 4, 128
    eps = 1e-12

    key = jax.random.PRNGKey(0)
    ks = jax.random.split(key, 17)

    def w(k, fan_in, shape):
        return jax.random.normal(k, shape, dtype=jnp.float32) / jnp.sqrt(fan_in)

    params = {
        "wq": w(ks[0], H, (H, H)), "bq": 0.02 * jax.random.normal(ks[1], (H,)),
        "wk": w(ks[2], H, (H, H)), "bk": 0.02 * jax.random.normal(ks[3], (H,)),
        "wv": w(ks[4], H, (H, H)), "bv": 0.02 * jax.random.normal(ks[5], (H,)),
        "wo": w(ks[6], H, (H, H)), "bo": 0.02 * jax.random.normal(ks[7], (H,)),
        "wi": w(ks[8], H, (H, I)), "bi": 0.02 * jax.random.normal(ks[9], (I,)),
        "wo2": w(ks[10], I, (I, H)), "bo2": 0.02 * jax.random.normal(ks[11], (H,)),
        "ln1_g": 1.0 + 0.1 * jax.random.normal(ks[12], (H,)),
        "ln1_b": 0.05 * jax.random.normal(ks[13], (H,)),
        "ln2_g": 1.0 + 0.1 * jax.random.normal(ks[14], (H,)),
        "ln2_b": 0.05 * jax.random.normal(ks[15], (H,)),
    }
    x = jax.random.normal(ks[16], (B, S, H), dtype=jnp.float32)

    ref = _reference(x, params, num_heads=nH, eps=eps)

    # f32 path: strict correctness check (exact softmax reciprocal in-kernel).
    prep_f32 = prepare_params(params, compute_dtype=jnp.float32)
    out_f32 = roberta_layer(x, prep_f32, num_heads=nH, eps=eps)
    jax.block_until_ready(out_f32)
    assert out_f32.shape == ref.shape
    # Tolerance covers MXU accumulation-order / default matmul precision
    # differences across the chained matmuls plus the in-kernel erf poly.
    assert jnp.allclose(out_f32, ref, atol=2e-3, rtol=2e-3), (
        "f32 mismatch, max abs diff = %g" % float(jnp.max(jnp.abs(out_f32 - ref))))

    # bf16-operand path (perf mode): bf16 matmul operands + approx EUP
    # reciprocal for the softmax denominator; f32 accumulation, residuals and
    # LayerNorm statistics -> small, bounded numeric deviation expected.
    prep_bf16 = prepare_params(params, compute_dtype=jnp.bfloat16)
    out_bf16 = roberta_layer(x, prep_bf16, num_heads=nH, eps=eps)
    jax.block_until_ready(out_bf16)
    diff = float(jnp.max(jnp.abs(out_bf16.astype(jnp.float32) - ref)))
    assert diff < 0.25, "bf16 path deviates too much: %g" % diff

    print("KERNEL_OK")
</pallas_src>

<mosaic_0001>
module attributes {stable_mosaic.version = 11 : i64} {
  func.func @_attention_block_kernel(%arg0: i32, %arg1: memref<1x8x32xf32, #tpu.memory_space<vmem>>, %arg2: memref<32x96xf32, #tpu.memory_space<vmem>>, %arg3: memref<1x96xf32, #tpu.memory_space<vmem>>, %arg4: memref<32x32xf32, #tpu.memory_space<vmem>>, %arg5: memref<1x32xf32, #tpu.memory_space<vmem>>, %arg6: memref<1x32xf32, #tpu.memory_space<vmem>>, %arg7: memref<1x32xf32, #tpu.memory_space<vmem>>, %arg8: memref<1x8x32xf32, #tpu.memory_space<vmem>>) attributes {dimension_semantics = [#tpu.dimension_semantics<parallel>], iteration_bounds = array<i64: 2>, scalar_prefetch = 0 : i64, scratch_operands = 0 : i64, tpu.core_type = #tpu.core_type<tc>, window_params = [{transform_indices = @transform_0, window_bounds = array<i64: 1, 8, 32>}, {pipeline_mode = #tpu.pipeline_mode<synchronous>, transform_indices = @transform_1, window_bounds = array<i64: 32, 96>}, {pipeline_mode = #tpu.pipeline_mode<synchronous>, transform_indices = @transform_2, window_bounds = array<i64: 1, 96>}, {pipeline_mode = #tpu.pipeline_mode<synchronous>, transform_indices = @transform_3, window_bounds = array<i64: 32, 32>}, {pipeline_mode = #tpu.pipeline_mode<synchronous>, transform_indices = @transform_4, window_bounds = array<i64: 1, 32>}, {pipeline_mode = #tpu.pipeline_mode<synchronous>, transform_indices = @transform_5, window_bounds = array<i64: 1, 32>}, {pipeline_mode = #tpu.pipeline_mode<synchronous>, transform_indices = @transform_6, window_bounds = array<i64: 1, 32>}, {transform_indices = @transform_7, window_bounds = array<i64: 1, 8, 32>}]} {
    %c0 = arith.constant 0 : index
    %c0_0 = arith.constant 0 : index
    %c0_1 = arith.constant 0 : index
    %0 = vector.load %arg1[%c0, %c0_0, %c0_1] : memref<1x8x32xf32, #tpu.memory_space<vmem>>, vector<1x8x32xf32>
    %1 = vector.shape_cast %0 : vector<1x8x32xf32> to vector<8x32xf32>
    %c0_2 = arith.constant 0 : index
    %c0_3 = arith.constant 0 : index
    %c0_4 = arith.constant 0 : index
    %2 = vector.load %arg1[%c0_2, %c0_3, %c0_4] : memref<1x8x32xf32, #tpu.memory_space<vmem>>, vector<1x8x32xf32>
    %3 = vector.shape_cast %2 : vector<1x8x32xf32> to vector<8x32xf32>
    %c0_5 = arith.constant 0 : index
    %c0_6 = arith.constant 0 : index
    %4 = vector.load %arg2[%c0_5, %c0_6] : memref<32x96xf32, #tpu.memory_space<vmem>>, vector<32x96xf32>
    %cst = arith.constant dense<0.000000e+00> : vector<8x96xf32>
    %5 = tpu.matmul %3, %4, %cst {dimension_numbers = #tpu.dot_dimension_numbers<[1], [0], [0], [1], [0, 0, 1, 1], [], []>} : vector<8x32xf32>, vector<32x96xf32>, vector<8x96xf32> -> vector<8x96xf32>
    %c0_7 = arith.constant 0 : index
    %c0_8 = arith.constant 0 : index
    %6 = vector.load %arg3[%c0_7, %c0_8] : memref<1x96xf32, #tpu.memory_space<vmem>>, vector<1x96xf32>
    %7 = vector.broadcast %6 : vector<1x96xf32> to vector<8x96xf32>
    %8 = arith.addf %5, %7 : vector<8x96xf32>
    %9 = vector.extract_strided_slice %8 {offsets = [0, 0], sizes = [8, 32], strides = [1, 1]} : vector<8x96xf32> to vector<8x32xf32>
    %cst_9 = arith.constant 0.353553385 : f32
    %10 = vector.broadcast %cst_9 : f32 to vector<8x32xf32>
    %11 = arith.mulf %9, %10 : vector<8x32xf32>
    %12 = vector.extract_strided_slice %8 {offsets = [0, 32], sizes = [8, 32], strides = [1, 1]} : vector<8x96xf32> to vector<8x32xf32>
    %13 = vector.extract_strided_slice %8 {offsets = [0, 64], sizes = [8, 32], strides = [1, 1]} : vector<8x96xf32> to vector<8x32xf32>
    %14 = vector.extract_strided_slice %11 {offsets = [0, 0], sizes = [8, 8], strides = [1, 1]} : vector<8x32xf32> to vector<8x8xf32>
    %15 = vector.extract_strided_slice %12 {offsets = [0, 0], sizes = [8, 8], strides = [1, 1]} : vector<8x32xf32> to vector<8x8xf32>
    %16 = vector.extract_strided_slice %13 {offsets = [0, 0], sizes = [8, 8], strides = [1, 1]} : vector<8x32xf32> to vector<8x8xf32>
    "tpu.trace_start"() <{level = 10 : i32, message = "qd,kd->qk"}> : () -> ()
    %cst_10 = arith.constant dense<0.000000e+00> : vector<8x8xf32>
    %17 = tpu.matmul %14, %15, %cst_10 {dimension_numbers = #tpu.dot_dimension_numbers<[1], [1], [0], [0], [0, 0, 1, 0], [], []>} : vector<8x8xf32>, vector<8x8xf32>, vector<8x8xf32> -> vector<8x8xf32>
    "tpu.trace_stop"() : () -> ()
    %cst_11 = arith.constant dense<0xFF800000> : vector<8xf32>
    %18 = vector.multi_reduction <maximumf>, %17, %cst_11 [1] : vector<8x8xf32> to vector<8xf32>
    %19 = vector.shape_cast %18 : vector<8xf32> to vector<8x1xf32>
    %20 = vector.broadcast %19 : vector<8x1xf32> to vector<8x8xf32>
    %21 = arith.subf %17, %20 : vector<8x8xf32>
    %22 = math.exp %21 : vector<8x8xf32>
    %cst_12 = arith.constant dense<0.000000e+00> : vector<8xf32>
    %23 = vector.multi_reduction <add>, %22, %cst_12 [1] : vector<8x8xf32> to vector<8xf32>
    %24 = vector.shape_cast %23 : vector<8xf32> to vector<8x1xf32>
    %cst_13 = arith.constant dense<0.000000e+00> : vector<8x8xf32>
    %25 = tpu.matmul %22, %16, %cst_13 {dimension_numbers = #tpu.dot_dimension_numbers<[1], [0], [0], [1], [0, 0, 1, 1], [], []>} : vector<8x8xf32>, vector<8x8xf32>, vector<8x8xf32> -> vector<8x8xf32>
    %cst_14 = arith.constant 1.000000e+00 : f32
    %26 = vector.broadcast %cst_14 : f32 to vector<8x1xf32>
    %27 = arith.divf %26, %24 : vector<8x1xf32>
    %28 = vector.broadcast %27 : vector<8x1xf32> to vector<8x8xf32>
    %29 = arith.mulf %25, %28 : vector<8x8xf32>
    %30 = vector.extract_strided_slice %11 {offsets = [0, 8], sizes = [8, 8], strides = [1, 1]} : vector<8x32xf32> to vector<8x8xf32>
    %31 = vector.extract_strided_slice %12 {offsets = [0, 8], sizes = [8, 8], strides = [1, 1]} : vector<8x32xf32> to vector<8x8xf32>
    %32 = vector.extract_strided_slice %13 {offsets = [0, 8], sizes = [8, 8], strides = [1, 1]} : vector<8x32xf32> to vector<8x8xf32>
    "tpu.trace_start"() <{level = 10 : i32, message = "qd,kd->qk"}> : () -> ()
    %cst_15 = arith.constant dense<0.000000e+00> : vector<8x8xf32>
    %33 = tpu.matmul %30, %31, %cst_15 {dimension_numbers = #tpu.dot_dimension_numbers<[1], [1], [0], [0], [0, 0, 1, 0], [], []>} : vector<8x8xf32>, vector<8x8xf32>, vector<8x8xf32> -> vector<8x8xf32>
    "tpu.trace_stop"() : () -> ()
    %cst_16 = arith.constant dense<0xFF800000> : vector<8xf32>
    %34 = vector.multi_reduction <maximumf>, %33, %cst_16 [1] : vector<8x8xf32> to vector<8xf32>
    %35 = vector.shape_cast %34 : vector<8xf32> to vector<8x1xf32>
    %36 = vector.broadcast %35 : vector<8x1xf32> to vector<8x8xf32>
    %37 = arith.subf %33, %36 : vector<8x8xf32>
    %38 = math.exp %37 : vector<8x8xf32>
    %cst_17 = arith.constant dense<0.000000e+00> : vector<8xf32>
    %39 = vector.multi_reduction <add>, %38, %cst_17 [1] : vector<8x8xf32> to vector<8xf32>
    %40 = vector.shape_cast %39 : vector<8xf32> to vector<8x1xf32>
    %cst_18 = arith.constant dense<0.000000e+00> : vector<8x8xf32>
    %41 = tpu.matmul %38, %32, %cst_18 {dimension_numbers = #tpu.dot_dimension_numbers<[1], [0], [0], [1], [0, 0, 1, 1], [], []>} : vector<8x8xf32>, vector<8x8xf32>, vector<8x8xf32> -> vector<8x8xf32>
    %cst_19 = arith.constant 1.000000e+00 : f32
    %42 = vector.broadcast %cst_19 : f32 to vector<8x1xf32>
    %43 = arith.divf %42, %40 : vector<8x1xf32>
    %44 = vector.broadcast %43 : vector<8x1xf32> to vector<8x8xf32>
    %45 = arith.mulf %41, %44 : vector<8x8xf32>
    %46 = vector.extract_strided_slice %11 {offsets = [0, 16], sizes = [8, 8], strides = [1, 1]} : vector<8x32xf32> to vector<8x8xf32>
    %47 = vector.extract_strided_slice %12 {offsets = [0, 16], sizes = [8, 8], strides = [1, 1]} : vector<8x32xf32> to vector<8x8xf32>
    %48 = vector.extract_strided_slice %13 {offsets = [0, 16], sizes = [8, 8], strides = [1, 1]} : vector<8x32xf32> to vector<8x8xf32>
    "tpu.trace_start"() <{level = 10 : i32, message = "qd,kd->qk"}> : () -> ()
    %cst_20 = arith.constant dense<0.000000e+00> : vector<8x8xf32>
    %49 = tpu.matmul %46, %47, %cst_20 {dimension_numbers = #tpu.dot_dimension_numbers<[1], [1], [0], [0], [0, 0, 1, 0], [], []>} : vector<8x8xf32>, vector<8x8xf32>, vector<8x8xf32> -> vector<8x8xf32>
    "tpu.trace_stop"() : () -> ()
    %cst_21 = arith.constant dense<0xFF800000> : vector<8xf32>
    %50 = vector.multi_reduction <maximumf>, %49, %cst_21 [1] : vector<8x8xf32> to vector<8xf32>
    %51 = vector.shape_cast %50 : vector<8xf32> to vector<8x1xf32>
    %52 = vector.broadcast %51 : vector<8x1xf32> to vector<8x8xf32>
    %53 = arith.subf %49, %52 : vector<8x8xf32>
    %54 = math.exp %53 : vector<8x8xf32>
    %cst_22 = arith.constant dense<0.000000e+00> : vector<8xf32>
    %55 = vector.multi_reduction <add>, %54, %cst_22 [1] : vector<8x8xf32> to vector<8xf32>
    %56 = vector.shape_cast %55 : vector<8xf32> to vector<8x1xf32>
    %cst_23 = arith.constant dense<0.000000e+00> : vector<8x8xf32>
    %57 = tpu.matmul %54, %48, %cst_23 {dimension_numbers = #tpu.dot_dimension_numbers<[1], [0], [0], [1], [0, 0, 1, 1], [], []>} : vector<8x8xf32>, vector<8x8xf32>, vector<8x8xf32> -> vector<8x8xf32>
    %cst_24 = arith.constant 1.000000e+00 : f32
    %58 = vector.broadcast %cst_24 : f32 to vector<8x1xf32>
    %59 = arith.divf %58, %56 : vector<8x1xf32>
    %60 = vector.broadcast %59 : vector<8x1xf32> to vector<8x8xf32>
    %61 = arith.mulf %57, %60 : vector<8x8xf32>
    %62 = vector.extract_strided_slice %11 {offsets = [0, 24], sizes = [8, 8], strides = [1, 1]} : vector<8x32xf32> to vector<8x8xf32>
    %63 = vector.extract_strided_slice %12 {offsets = [0, 24], sizes = [8, 8], strides = [1, 1]} : vector<8x32xf32> to vector<8x8xf32>
    %64 = vector.extract_strided_slice %13 {offsets = [0, 24], sizes = [8, 8], strides = [1, 1]} : vector<8x32xf32> to vector<8x8xf32>
    "tpu.trace_start"() <{level = 10 : i32, message = "qd,kd->qk"}> : () -> ()
    %cst_25 = arith.constant dense<0.000000e+00> : vector<8x8xf32>
    %65 = tpu.matmul %62, %63, %cst_25 {dimension_numbers = #tpu.dot_dimension_numbers<[1], [1], [0], [0], [0, 0, 1, 0], [], []>} : vector<8x8xf32>, vector<8x8xf32>, vector<8x8xf32> -> vector<8x8xf32>
    "tpu.trace_stop"() : () -> ()
    %cst_26 = arith.constant dense<0xFF800000> : vector<8xf32>
    %66 = vector.multi_reduction <maximumf>, %65, %cst_26 [1] : vector<8x8xf32> to vector<8xf32>
    %67 = vector.shape_cast %66 : vector<8xf32> to vector<8x1xf32>
    %68 = vector.broadcast %67 : vector<8x1xf32> to vector<8x8xf32>
    %69 = arith.subf %65, %68 : vector<8x8xf32>
    %70 = math.exp %69 : vector<8x8xf32>
    %cst_27 = arith.constant dense<0.000000e+00> : vector<8xf32>
    %71 = vector.multi_reduction <add>, %70, %cst_27 [1] : vector<8x8xf32> to vector<8xf32>
    %72 = vector.shape_cast %71 : vector<8xf32> to vector<8x1xf32>
    %cst_28 = arith.constant dense<0.000000e+00> : vector<8x8xf32>
    %73 = tpu.matmul %70, %64, %cst_28 {dimension_numbers = #tpu.dot_dimension_numbers<[1], [0], [0], [1], [0, 0, 1, 1], [], []>} : vector<8x8xf32>, vector<8x8xf32>, vector<8x8xf32> -> vector<8x8xf32>
    %cst_29 = arith.constant 1.000000e+00 : f32
    %74 = vector.broadcast %cst_29 : f32 to vector<8x1xf32>
    %75 = arith.divf %74, %72 : vector<8x1xf32>
    %76 = vector.broadcast %75 : vector<8x1xf32> to vector<8x8xf32>
    %77 = arith.mulf %73, %76 : vector<8x8xf32>
    %78 = tpu.concatenate %29, %45, %61, %77 in 1 : vector<8x8xf32>, vector<8x8xf32>, vector<8x8xf32>, vector<8x8xf32> -> vector<8x32xf32>
    %c0_30 = arith.constant 0 : index
    %c0_31 = arith.constant 0 : index
    %79 = vector.load %arg4[%c0_30, %c0_31] : memref<32x32xf32, #tpu.memory_space<vmem>>, vector<32x32xf32>
    %cst_32 = arith.constant dense<0.000000e+00> : vector<8x32xf32>
    %80 = tpu.matmul %78, %79, %cst_32 {dimension_numbers = #tpu.dot_dimension_numbers<[1], [0], [0], [1], [0, 0, 1, 1], [], []>} : vector<8x32xf32>, vector<32x32xf32>, vector<8x32xf32> -> vector<8x32xf32>
    %c0_33 = arith.constant 0 : index
    %c0_34 = arith.constant 0 : index
    %81 = vector.load %arg5[%c0_33, %c0_34] : memref<1x32xf32, #tpu.memory_space<vmem>>, vector<1x32xf32>
    %82 = vector.broadcast %81 : vector<1x32xf32> to vector<8x32xf32>
    %83 = arith.addf %80, %82 : vector<8x32xf32>
    %84 = arith.addf %83, %1 : vector<8x32xf32>
    %c0_35 = arith.constant 0 : index
    %c0_36 = arith.constant 0 : index
    %85 = vector.load %arg6[%c0_35, %c0_36] : memref<1x32xf32, #tpu.memory_space<vmem>>, vector<1x32xf32>
    %c0_37 = arith.constant 0 : index
    %c0_38 = arith.constant 0 : index
    %86 = vector.load %arg7[%c0_37, %c0_38] : memref<1x32xf32, #tpu.memory_space<vmem>>, vector<1x32xf32>
    %cst_39 = arith.constant dense<0.000000e+00> : vector<8xf32>
    %87 = vector.multi_reduction <add>, %84, %cst_39 [1] : vector<8x32xf32> to vector<8xf32>
    %88 = vector.shape_cast %87 : vector<8xf32> to vector<8x1xf32>
    %cst_40 = arith.constant 3.200000e+01 : f32
    %89 = vector.broadcast %cst_40 : f32 to vector<8x1xf32>
    %90 = arith.divf %88, %89 : vector<8x1xf32>
    %91 = vector.broadcast %90 : vector<8x1xf32> to vector<8x32xf32>
    %92 = arith.subf %84, %91 : vector<8x32xf32>
    %93 = arith.mulf %92, %92 : vector<8x32xf32>
    %cst_41 = arith.constant dense<0.000000e+00> : vector<8xf32>
    %94 = vector.multi_reduction <add>, %93, %cst_41 [1] : vector<8x32xf32> to vector<8xf32>
    %95 = vector.shape_cast %94 : vector<8xf32> to vector<8x1xf32>
    %cst_42 = arith.constant 3.200000e+01 : f32
    %96 = vector.broadcast %cst_42 : f32 to vector<8x1xf32>
    %97 = arith.divf %95, %96 : vector<8x1xf32>
    %cst_43 = arith.constant 9.99999996E-13 : f32
    %98 = vector.broadcast %cst_43 : f32 to vector<8x1xf32>
    %99 = arith.addf %97, %98 : vector<8x1xf32>
    %100 = math.rsqrt %99 : vector<8x1xf32>
    %101 = vector.broadcast %100 : vector<8x1xf32> to vector<8x32xf32>
    %102 = arith.mulf %92, %101 : vector<8x32xf32>
    %103 = vector.broadcast %85 : vector<1x32xf32> to vector<8x32xf32>
    %104 = arith.mulf %102, %103 : vector<8x32xf32>
    %105 = vector.broadcast %86 : vector<1x32xf32> to vector<8x32xf32>
    %106 = arith.addf %104, %105 : vector<8x32xf32>
    %c0_44 = arith.constant 0 : index
    %c0_45 = arith.constant 0 : index
    %c0_46 = arith.constant 0 : index
    %107 = vector.load %arg8[%c0_44, %c0_45, %c0_46] : memref<1x8x32xf32, #tpu.memory_space<vmem>>, vector<1x8x32xf32>
    %108 = vector.shape_cast %107 : vector<1x8x32xf32> to vector<8x32xf32>
    %109 = vector.shape_cast %106 : vector<8x32xf32> to vector<1x8x32xf32>
    tpu.vector_store %arg8[%c0_44, %c0_45, %c0_46], %109 {strides = array<i32>} : memref<1x8x32xf32, #tpu.memory_space<vmem>>, vector<1x8x32xf32>,
    return
  }
  func.func @transform_0(%arg0: i32) -> (i32, i32, i32) {
    %c0_i32 = arith.constant 0 : i32
    %c0_i32_0 = arith.constant 0 : i32
    %c0_i32_1 = arith.constant 0 : i32
    return %arg0, %c0_i32, %c0_i32_0 : i32, i32, i32
  }
  func.func @transform_1(%arg0: i32) -> (i32, i32) {
    %c0_i32 = arith.constant 0 : i32
    %c0_i32_0 = arith.constant 0 : i32
    %c0_i32_1 = arith.constant 0 : i32
    return %c0_i32, %c0_i32_0 : i32, i32
  }
  func.func @transform_2(%arg0: i32) -> (i32, i32) {
    %c0_i32 = arith.constant 0 : i32
    %c0_i32_0 = arith.constant 0 : i32
    %c0_i32_1 = arith.constant 0 : i32
    return %c0_i32, %c0_i32_0 : i32, i32
  }
  func.func @transform_3(%arg0: i32) -> (i32, i32) {
    %c0_i32 = arith.constant 0 : i32
    %c0_i32_0 = arith.constant 0 : i32
    %c0_i32_1 = arith.constant 0 : i32
    return %c0_i32, %c0_i32_0 : i32, i32
  }
  func.func @transform_4(%arg0: i32) -> (i32, i32) {
    %c0_i32 = arith.constant 0 : i32
    %c0_i32_0 = arith.constant 0 : i32
    %c0_i32_1 = arith.constant 0 : i32
    return %c0_i32, %c0_i32_0 : i32, i32
  }
  func.func @transform_5(%arg0: i32) -> (i32, i32) {
    %c0_i32 = arith.constant 0 : i32
    %c0_i32_0 = arith.constant 0 : i32
    %c0_i32_1 = arith.constant 0 : i32
    return %c0_i32, %c0_i32_0 : i32, i32
  }
  func.func @transform_6(%arg0: i32) -> (i32, i32) {
    %c0_i32 = arith.constant 0 : i32
    %c0_i32_0 = arith.constant 0 : i32
    %c0_i32_1 = arith.constant 0 : i32
    return %c0_i32, %c0_i32_0 : i32, i32
  }
  func.func @transform_7(%arg0: i32) -> (i32, i32, i32) {
    %c0_i32 = arith.constant 0 : i32
    %c0_i32_0 = arith.constant 0 : i32
    %c0_i32_1 = arith.constant 0 : i32
    return %arg0, %c0_i32, %c0_i32_0 : i32, i32, i32
  }
}

</mosaic_0001>

<llo_original>
// kernel: tpu_custom_call.1
$region0: #{tpu_custom_call.1}
  #allocation0 [shape = 'u32[]', space=smem, size = 0x4, offset = 0x4, fixed_abs, tag = 'smem constant byte address 0x4 - core index']
  #allocation1 [shape = 'u32[144,128]{1,0:T(1,128)}', space=vmem, size = 0x12000, scoped, tag = 'internal scratch']
  %s0 = inlined_call_operand.hbm [shape: f32[2,8,32], index: 0, kind: input, shape index: {}]
  %s1 = inlined_call_operand.hbm [shape: f32[32,96], index: 1, kind: input, shape index: {}]
  %s2 = inlined_call_operand.vmem [shape: f32[1,96], index: 2, kind: input, shape index: {}]
  %s3 = inlined_call_operand.hbm [shape: f32[32,32], index: 3, kind: input, shape index: {}]
  %s4 = inlined_call_operand.vmem [shape: f32[1,32], index: 4, kind: input, shape index: {}]
  %s5 = inlined_call_operand.vmem [shape: f32[1,32], index: 5, kind: input, shape index: {}]
  %s6 = inlined_call_operand.vmem [shape: f32[1,32], index: 6, kind: input, shape index: {}]
  %s7 = inlined_call_operand.hbm [shape: f32[2,8,32], index: 7, kind: output, shape index: {}]
  %s8 = sld [smem:[#allocation0]]
  $region73: #{tpu_custom_call.1} parent=0
    _
  %s10 = ssub.s32 1, %s8
  %s11 = scalar_select 0, %s10, %s8
  $region1: #{tpu_custom_call.1} parent=0
    #allocation2 [shape = 'u8[8192]{0}', space=vmem, size = 0x2000, scoped, tag = 'input window, operand 0']
    #allocation3 [shape = 's32[2]{0}', space=sflag, size = 0x8, scoped, tag = 'scoped memory for tpu_custom_call.1']
    #allocation4 [shape = 's32[2]{0}', space=sflag, size = 0x8, scoped, tag = 'scoped memory for tpu_custom_call.1']
    #allocation5 [shape = 'u8[16384]{0}', space=vmem, size = 0x4000, scoped, tag = 'input window, operand 1, single buffered']
    #allocation6 [shape = 's32[1]{0}', space=sflag, size = 0x4, scoped, tag = 'scoped memory for tpu_custom_call.1']
    #allocation7 [shape = 'u8[16384]{0}', space=vmem, size = 0x4000, scoped, tag = 'input window, operand 3, single buffered']
    #allocation8 [shape = 'u8[8192]{0}', space=vmem, size = 0x2000, scoped, tag = 'output window, operand 0']
    %12 = vsyncpa [#allocation3], 0
    %s13 = scalar_lea.sflag [#allocation3], 1
    %14 = vsyncpa %s13, 0
    %15 = vsyncpa [#allocation6], 0
    %16 = vsyncpa [#allocation4], 0
    %s17 = scalar_lea.sflag [#allocation4], 1
    %18 = vsyncpa %s17, 0
    loop: start=0, step=1, limit=4
    $region2: #{tpu_custom_call.1} parent=1 // loop_pre_header
      _
    $region3: #{tpu_custom_call.1} parent=1 // loop_header
      %s20 = sphi 0, %s24
      %p21 = scmp.ge.s32.totalorder %s20, 4
      %s30 = sphi 0, %s32
      %s33 = sphi 0, %s30
      %s34 = sphi 0, %s33
      %s50 = sphi 0, %s34
      %s54 = sphi 0, %s54
      %s56 = sphi 0, %s54
      %s57 = sphi 0, %s56
      %s71 = sphi 0, %s57
      %s75 = sphi 0, %s75
      %s77 = sphi 0, %s75
      %s78 = sphi 0, %s77
      %s92 = sphi 0, %s78
      %s96 = sphi 0, %s96
      %s98 = sphi 0, %s96
      %s99 = sphi 0, %s98
      %s113 = sphi 0, %s99
      %s117 = sphi 0, %s117
      %s119 = sphi 0, %s117
      %s120 = sphi 0, %s119
      %s134 = sphi 0, %s120
      %s138 = sphi 0, %s138
      %s140 = sphi 0, %s138
      %s141 = sphi 0, %s140
      %s155 = sphi 0, %s141
      %s159 = sphi 0, %s159
      %s161 = sphi 0, %s159
      %s162 = sphi 0, %s161
      %s176 = sphi 0, %s162
      %s182 = sphi 0, %s184
      %s185 = sphi 0, %s182
      %s186 = sphi 0, %s185
      %s202 = sphi 0, %s186
    $region4: #{tpu_custom_call.1} parent=1 // loop_header_branch
      %23 = sbr.rel (%p21) target = $region8
    $region5: #{tpu_custom_call.1} parent=1 // loop_body
      %s25 = ssub.s32 %s20, 1
      %s26 = ssub.s32 %s20, 2
      %s27 = sadd.s32 %s20, 1
      %s28 = ssub.s32 %s20, %s27
      %p29 = scmp.eq.s32.totalorder %s28, 0
      %s31 = sadd.s32 %s30, 1
      %s32 = scalar_select %p29, %s30, %s31
      %p35 = pneg %p29
      %p36 = scmp.eq.s32.totalorder %s20, 1
      %p37 = por %p35, %p36
      %p38 = scmp.ne.s32.totalorder %s30, %s33
      %p39 = scmp.eq.s32.totalorder %s20, 0
      %p40 = por %p38, %p39
      %p41 = scmp.ne.s32.totalorder %s30, %s33
      %p42 = scmp.eq.s32.totalorder %s25, 1
      %p43 = por %p41, %p42
      %p44 = scmp.ne.s32.totalorder %s33, %s34
      %p45 = scmp.eq.s32.totalorder %s25, 0
      %p46 = por %p44, %p45
      %p47 = scmp.ne.s32.totalorder %s33, %s34
      %p48 = scmp.eq.s32.totalorder %s26, 1
      %p49 = por %p47, %p48
      %p51 = scmp.ne.s32.totalorder %s34, %s50
      %p52 = scmp.eq.s32.totalorder %s26, 0
      %p53 = por %p51, %p52
      %s55 = sadd.s32 %s54, 1
      %p58 = scmp.eq.s32.totalorder %s20, 1
      %p59 = scmp.ne.s32.totalorder %s54, %s56
      %p60 = scmp.eq.s32.totalorder %s20, 0
      %p61 = por %p59, %p60
      %p62 = scmp.ne.s32.totalorder %s54, %s56
      %p63 = scmp.eq.s32.totalorder %s25, 1
      %p64 = por %p62, %p63
      %p65 = scmp.ne.s32.totalorder %s56, %s57
      %p66 = scmp.eq.s32.totalorder %s25, 0
      %p67 = por %p65, %p66
      %p68 = scmp.ne.s32.totalorder %s56, %s57
      %p69 = scmp.eq.s32.totalorder %s26, 1
      %p70 = por %p68, %p69
      %p72 = scmp.ne.s32.totalorder %s57, %s71
      %p73 = scmp.eq.s32.totalorder %s26, 0
      %p74 = por %p72, %p73
      %s76 = sadd.s32 %s75, 1
      %p79 = scmp.eq.s32.totalorder %s20, 1
      %p80 = scmp.ne.s32.totalorder %s75, %s77
      %p81 = scmp.eq.s32.totalorder %s20, 0
      %p82 = por %p80, %p81
      %p83 = scmp.ne.s32.totalorder %s75, %s77
      %p84 = scmp.eq.s32.totalorder %s25, 1
      %p85 = por %p83, %p84
      %p86 = scmp.ne.s32.totalorder %s77, %s78
      %p87 = scmp.eq.s32.totalorder %s25, 0
      %p88 = por %p86, %p87
      %p89 = scmp.ne.s32.totalorder %s77, %s78
      %p90 = scmp.eq.s32.totalorder %s26, 1
      %p91 = por %p89, %p90
      %p93 = scmp.ne.s32.totalorder %s78, %s92
      %p94 = scmp.eq.s32.totalorder %s26, 0
      %p95 = por %p93, %p94
      %s97 = sadd.s32 %s96, 1
      %p100 = scmp.eq.s32.totalorder %s20, 1
      %p101 = scmp.ne.s32.totalorder %s96, %s98
      %p102 = scmp.eq.s32.totalorder %s20, 0
      %p103 = por %p101, %p102
      %p104 = scmp.ne.s32.totalorder %s96, %s98
      %p105 = scmp.eq.s32.totalorder %s25, 1
      %p106 = por %p104, %p105
      %p107 = scmp.ne.s32.totalorder %s98, %s99
      %p108 = scmp.eq.s32.totalorder %s25, 0
      %p109 = por %p107, %p108
      %p110 = scmp.ne.s32.totalorder %s98, %s99
      %p111 = scmp.eq.s32.totalorder %s26, 1
      %p112 = por %p110, %p111
      %p114 = scmp.ne.s32.totalorder %s99, %s113
      %p115 = scmp.eq.s32.totalorder %s26, 0
      %p116 = por %p114, %p115
      %s118 = sadd.s32 %s117, 1
      %p121 = scmp.eq.s32.totalorder %s20, 1
      %p122 = scmp.ne.s32.totalorder %s117, %s119
      %p123 = scmp.eq.s32.totalorder %s20, 0
      %p124 = por %p122, %p123
      %p125 = scmp.ne.s32.totalorder %s117, %s119
      %p126 = scmp.eq.s32.totalorder %s25, 1
      %p127 = por %p125, %p126
      %p128 = scmp.ne.s32.totalorder %s119, %s120
      %p129 = scmp.eq.s32.totalorder %s25, 0
      %p130 = por %p128, %p129
      %p131 = scmp.ne.s32.totalorder %s119, %s120
      %p132 = scmp.eq.s32.totalorder %s26, 1
      %p133 = por %p131, %p132
      %p135 = scmp.ne.s32.totalorder %s120, %s134
      %p136 = scmp.eq.s32.totalorder %s26, 0
      %p137 = por %p135, %p136
      %s139 = sadd.s32 %s138, 1
      %p142 = scmp.eq.s32.totalorder %s20, 1
      %p143 = scmp.ne.s32.totalorder %s138, %s140
      %p144 = scmp.eq.s32.totalorder %s20, 0
      %p145 = por %p143, %p144
      %p146 = scmp.ne.s32.totalorder %s138, %s140
      %p147 = scmp.eq.s32.totalorder %s25, 1
      %p148 = por %p146, %p147
      %p149 = scmp.ne.s32.totalorder %s140, %s141
      %p150 = scmp.eq.s32.totalorder %s25, 0
      %p151 = por %p149, %p150
      %p152 = scmp.ne.s32.totalorder %s140, %s141
      %p153 = scmp.eq.s32.totalorder %s26, 1
      %p154 = por %p152, %p153
      %p156 = scmp.ne.s32.totalorder %s141, %s155
      %p157 = scmp.eq.s32.totalorder %s26, 0
      %p158 = por %p156, %p157
      %s160 = sadd.s32 %s159, 1
      %p163 = scmp.eq.s32.totalorder %s20, 1
      %p164 = scmp.ne.s32.totalorder %s159, %s161
      %p165 = scmp.eq.s32.totalorder %s20, 0
      %p166 = por %p164, %p165
      %p167 = scmp.ne.s32.totalorder %s159, %s161
      %p168 = scmp.eq.s32.totalorder %s25, 1
      %p169 = por %p167, %p168
      %p170 = scmp.ne.s32.totalorder %s161, %s162
      %p171 = scmp.eq.s32.totalorder %s25, 0
      %p172 = por %p170, %p171
      %p173 = scmp.ne.s32.totalorder %s161, %s162
      %p174 = scmp.eq.s32.totalorder %s26, 1
      %p175 = por %p173, %p174
      %p177 = scmp.ne.s32.totalorder %s162, %s176
      %p178 = scmp.eq.s32.totalorder %s26, 0
      %p179 = por %p177, %p178
      %s180 = ssub.s32 %s20, %s27
      %p181 = scmp.eq.s32.totalorder %s180, 0
      %s183 = sadd.s32 %s182, 1
      %s184 = scalar_select %p181, %s182, %s183
      %p187 = pneg %p181
      %p188 = scmp.eq.s32.totalorder %s20, 1
      %p189 = por %p187, %p188
      %p190 = scmp.ne.s32.totalorder %s182, %s185
      %p191 = scmp.eq.s32.totalorder %s20, 0
      %p192 = por %p190, %p191
      %p193 = scmp.ne.s32.totalorder %s182, %s185
      %p194 = scmp.eq.s32.totalorder %s25, 1
      %p195 = por %p193, %p194
      %p196 = scmp.ne.s32.totalorder %s185, %s186
      %p197 = scmp.eq.s32.totalorder %s25, 0
      %p198 = por %p196, %p197
      %p199 = scmp.ne.s32.totalorder %s185, %s186
      %p200 = scmp.eq.s32.totalorder %s26, 1
      %p201 = por %p199, %p200
      %p203 = scmp.ne.s32.totalorder %s186, %s202
      %p204 = scmp.eq.s32.totalorder %s26, 0
      %p205 = por %p203, %p204
      %p206 = scmp.le.s32.totalorder 1, %s20
      %p207 = scmp.lt.s32.totalorder %s20, 3
      %p208 = pnand %p206, %p207
      %p209 = pneg %p208
      // Predicated region
      $region9: #{tpu_custom_call.1} parent=5 // pred_check
        _
      $region10: #{tpu_custom_call.1} parent=5 // pred_check_branch
        %211 = sbr.rel (%p208) target = $region12
      $region11: #{tpu_custom_call.1} parent=5 // pred_region
        %s212 = ssub.s32 %s20, 1
        // Predicated region
        $region13: #{tpu_custom_call.1} parent=11 // pred_check
          %p213 = pneg %p67
        $region14: #{tpu_custom_call.1} parent=11 // pred_check_branch
          %215 = sbr.rel (%p213) target = $region16
        $region15: #{tpu_custom_call.1} parent=11 // pred_region
          %s217 = ssub.s32 512, 512
          %218 = vsyncadd [#allocation6], %s217
          %s219 = sshll.u32 [#allocation5], 4
          %s220 = int_to_ptr.vmem [resolvable:$true] %s219
          %225 = dma.hbm_to_vmem [thread:$0]  %s1, 512, %s220, [#allocation6], 128, 128, 8
        $region16: #{tpu_custom_call.1} parent=11 // pred_fallthru
          _
        // Predicated region
        $region17: #{tpu_custom_call.1} parent=11 // pred_check
          %p226 = pneg %p88
        $region18: #{tpu_custom_call.1} parent=11 // pred_check_branch
          %228 = sbr.rel (%p226) target = $region20
        $region19: #{tpu_custom_call.1} parent=11 // pred_region
          _
        $region20: #{tpu_custom_call.1} parent=11 // pred_fallthru
          _
        // Predicated region
        $region21: #{tpu_custom_call.1} parent=11 // pred_check
          %p229 = pneg %p109
        $region22: #{tpu_custom_call.1} parent=11 // pred_check_branch
          %231 = sbr.rel (%p229) target = $region24
        $region23: #{tpu_custom_call.1} parent=11 // pred_region
          %s233 = ssub.s32 512, 512
          %234 = vsyncadd [#allocation6], %s233
          %s235 = sshll.u32 [#allocation7], 4
          %s236 = int_to_ptr.vmem [resolvable:$true] %s235
          %241 = dma.hbm_to_vmem [thread:$0]  %s3, 512, %s236, [#allocation6], 128, 128, 8
        $region24: #{tpu_custom_call.1} parent=11 // pred_fallthru
          _
        // Predicated region
        $region25: #{tpu_custom_call.1} parent=11 // pred_check
          %p242 = pneg %p130
        $region26: #{tpu_custom_call.1} parent=11 // pred_check_branch
          %244 = sbr.rel (%p242) target = $region28
        $region27: #{tpu_custom_call.1} parent=11 // pred_region
          _
        $region28: #{tpu_custom_call.1} parent=11 // pred_fallthru
          _
        // Predicated region
        $region29: #{tpu_custom_call.1} parent=11 // pred_check
          %p245 = pneg %p151
        $region30: #{tpu_custom_call.1} parent=11 // pred_check_branch
          %247 = sbr.rel (%p245) target = $region32
        $region31: #{tpu_custom_call.1} parent=11 // pred_region
          _
        $region32: #{tpu_custom_call.1} parent=11 // pred_fallthru
          _
        // Predicated region
        $region33: #{tpu_custom_call.1} parent=11 // pred_check
          %p248 = pneg %p172
        $region34: #{tpu_custom_call.1} parent=11 // pred_check_branch
          %250 = sbr.rel (%p248) target = $region36
        $region35: #{tpu_custom_call.1} parent=11 // pred_region
          _
        $region36: #{tpu_custom_call.1} parent=11 // pred_fallthru
          _
      $region12: #{tpu_custom_call.1} parent=5 // pred_fallthru
        _
      %p251 = scmp.lt.s32.totalorder %s20, 2
      // Predicated region
      $region37: #{tpu_custom_call.1} parent=5 // pred_check
        %p252 = pneg %p251
      $region38: #{tpu_custom_call.1} parent=5 // pred_check_branch
        %254 = sbr.rel (%p252) target = $region40
      $region39: #{tpu_custom_call.1} parent=5 // pred_region
        // Predicated region
        $region41: #{tpu_custom_call.1} parent=39 // pred_check
          %p255 = pneg %p40
        $region42: #{tpu_custom_call.1} parent=39 // pred_check_branch
          %257 = sbr.rel (%p255) target = $region44
        $region43: #{tpu_custom_call.1} parent=39 // pred_region
          %s258 = sand.u32 %s30, 1
          %s259 = scalar_lea.sflag [#allocation3], %s258
          %s260 = sand.u32 %s30, 1
          %s261 = smul.addr %s260, 8
          %s262 = scalar_lea.vmem [#allocation2], %s261
          %s264 = ssub.s32 128, 128
          %265 = vsyncadd %s259, %s264
          %s266 = smul.addr %s20, 128
          %s267 = scalar_lea.hbm %s0, %s266
          %s269 = sshll.u32 %s262, 4
          %s270 = int_to_ptr.vmem [resolvable:$true] %s269
          %272 = dma.hbm_to_vmem [thread:$0]  %s267, 128, %s270, %s259
        $region44: #{tpu_custom_call.1} parent=39 // pred_fallthru
          _
      $region40: #{tpu_custom_call.1} parent=5 // pred_fallthru
        _
      %p273 = scmp.le.s32.totalorder 1, %s20
      %p274 = scmp.lt.s32.totalorder %s20, 3
      %p275 = pnand %p273, %p274
      %p276 = pneg %p275
      // Predicated region
      $region45: #{tpu_custom_call.1} parent=5 // pred_check
        _
      $region46: #{tpu_custom_call.1} parent=5 // pred_check_branch
        %278 = sbr.rel (%p275) target = $region48
      $region47: #{tpu_custom_call.1} parent=5 // pred_region
        %s279 = ssub.s32 %s20, 1
        %s280 = sand.u32 %s33, 1
        %s281 = scalar_lea.sflag [#allocation3], %s280
        %s282 = sand.u32 %s33, 1
        %s283 = smul.addr %s282, 8
        %s284 = scalar_lea.vmem [#allocation2], %s283
        // Predicated region
        $region49: #{tpu_custom_call.1} parent=47 // pred_check
          %p285 = pneg %p46
        $region50: #{tpu_custom_call.1} parent=47 // pred_check_branch
          %287 = sbr.rel (%p285) target = $region52
        $region51: #{tpu_custom_call.1} parent=47 // pred_region
          %288 = dma.done %s281, 128
        $region52: #{tpu_custom_call.1} parent=47 // pred_fallthru
          _
        // Predicated region
        $region53: #{tpu_custom_call.1} parent=47 // pred_check
          %p289 = pneg %p67
        $region54: #{tpu_custom_call.1} parent=47 // pred_check_branch
          %291 = sbr.rel (%p289) target = $region56
        $region55: #{tpu_custom_call.1} parent=47 // pred_region
          %292 = dma.done [#allocation6], 512
        $region56: #{tpu_custom_call.1} parent=47 // pred_fallthru
          _
        // Predicated region
        $region57: #{tpu_custom_call.1} parent=47 // pred_check
          %p293 = pneg %p109
        $region58: #{tpu_custom_call.1} parent=47 // pred_check_branch
          %295 = sbr.rel (%p293) target = $region60
        $region59: #{tpu_custom_call.1} parent=47 // pred_region
          %296 = dma.done [#allocation6], 512
        $region60: #{tpu_custom_call.1} parent=47 // pred_fallthru
          _
        %s297 = sand.u32 %s33, 1
        %s298 = scalar_lea.sflag [#allocation3], %s297
        %s299 = sand.u32 %s33, 1
        %s300 = smul.addr %s299, 8
        %s301 = scalar_lea.vmem [#allocation2], %s300
        %p302 = pneg %p46
        %p303 = pneg %p43
        %p304 = pneg %p67
        %p305 = pneg %p64
        %p306 = pneg %p88
        %p307 = pneg %p85
        %p308 = pneg %p109
        %p309 = pneg %p106
        %p310 = pneg %p130
        %p311 = pneg %p127
        %p312 = pneg %p151
        %p313 = pneg %p148
        %p314 = pneg %p172
        %p315 = pneg %p169
        %p316 = pneg %p198
        %p317 = pneg %p195
        %s318 = sand.u32 %s185, 1
        %s319 = scalar_lea.sflag [#allocation4], %s318
        %s320 = sand.u32 %s185, 1
        %s321 = smul.addr %s320, 8
        %s322 = scalar_lea.vmem [#allocation8], %s321
        %v323 = vld [vmem:[%s284] sm:$0xff]
        %v324 = vld [vmem:[#allocation5] sm:$0xff]
        %v325 = vld [vmem:[#allocation5 + $0x8] sm:$0xff]
        %v326 = vld [vmem:[#allocation5 + $0x10] sm:$0xff]
        %v327 = vld [vmem:[#allocation5 + $0x18] sm:$0xff]
        %v328 = vld [vmem:[%s2] sm:$0x1]
        %v330 = vlaneseq
        %v331 = vshrl.u32 %v330, 7
        %v332 = vsub.s32 0, %v331
        %v333 = vrot.slane %v328, %v332
        %vm335 = vcmask 261120
        %v337 = vsel %vm335, %v323, 0
        %339 = vmatprep.subr.mxu0 0.0
        %340 = vmatpush1.msra.mxu0 0.0
        %341 = vmatprep.subr.mxu0 0.0
        %342 = vmatpush1.msra.mxu0 0.0
        %343 = vmatprep.subr.mxu0 0.0
        %344 = vmatpush1.msra.mxu0 0.0
        %345 = vmatprep.subr.mxu0 0.0
        %346 = vmatpush1.msra.mxu0 0.0
        %347 = vmatprep.subr.mxu0 0.0
        %348 = vmatpush1.msra.mxu0 0.0
        %349 = vmatprep.subr.mxu0 0.0
        %350 = vmatpush1.msra.mxu0 0.0
        %351 = vmatprep.subr.mxu0 0.0
        %352 = vmatpush1.msra.mxu0 0.0
        %353 = vmatprep.subr.mxu0 0.0
        %354 = vmatpush1.msra.mxu0 0.0
        %355 = vmatprep.subr.mxu0 0.0
        %356 = vmatpush1.msra.mxu0 0.0
        %357 = vmatprep.subr.mxu0 0.0
        %358 = vmatpush1.msra.mxu0 0.0
        %359 = vmatprep.subr.mxu0 0.0
        %360 = vmatpush1.msra.mxu0 0.0
        %361 = vmatprep.subr.mxu0 0.0
        %362 = vmatpush1.msra.mxu0 0.0
        %363 = vmatprep.subr.mxu0 0.0
        %364 = vmatpush1.msra.mxu0 %v327
        %365 = vmatprep.subr.mxu0 0.0
        %366 = vmatpush1.msra.mxu0 %v326
        %367 = vmatprep.subr.mxu0 0.0
        %368 = vmatpush1.msra.mxu0 %v325
        %369 = vmatprep.subr.mxu0 0.0
        %370 = vmatpush1.msra.mxu0 %v324
        %371 = vmatprep.subr.mxu0 0.0
        %372 = vmatpush2.msra.mxu0 0.0
        %373 = vmatprep.subr.mxu0 0.0
        %374 = vmatpush2.msra.mxu0 0.0
        %375 = vmatprep.subr.mxu0 0.0
        %376 = vmatpush2.msra.mxu0 0.0
        %377 = vmatprep.subr.mxu0 0.0
        %378 = vmatpush2.msra.mxu0 0.0
        %379 = vmatprep.subr.mxu0 0.0
        %380 = vmatpush2.msra.mxu0 0.0
        %381 = vmatprep.subr.mxu0 0.0
        %382 = vmatpush2.msra.mxu0 0.0
        %383 = vmatprep.subr.mxu0 0.0
        %384 = vmatpush2.msra.mxu0 0.0
        %385 = vmatprep.subr.mxu0 0.0
        %386 = vmatpush2.msra.mxu0 0.0
        %387 = vmatprep.subr.mxu0 0.0
        %388 = vmatpush2.msra.mxu0 0.0
        %389 = vmatprep.subr.mxu0 0.0
        %390 = vmatpush2.msra.mxu0 0.0
        %391 = vmatprep.subr.mxu0 0.0
        %392 = vmatpush2.msra.mxu0 0.0
        %393 = vmatprep.subr.mxu0 0.0
        %394 = vmatpush2.msra.mxu0 0.0
        %395 = vmatprep.subr.mxu0 0.0
        %396 = vmatpush2.msra.mxu0 0.0
        %397 = vmatprep.subr.mxu0 0.0
        %398 = vmatpush2.msra.mxu0 0.0
        %399 = vmatprep.subr.mxu0 0.0
        %400 = vmatpush2.msra.mxu0 0.0
        %401 = vmatprep.subr.mxu0 0.0
        %402 = vmatpush2.msra.mxu0 0.0
        %403 = vmatprep.mubr.f32.mxu0 0.0
        %404 = vmatmul.mubr.f32.gmra.mxu0 %v337
        %v405 = vpop.f32.mrf.mxu0
        %v406 = vadd.f32 %v333, %v405
        %v407 = vpop.f32.mrf.mxu0
        %408 = vdwg.mxu0
        %v409 = vmul.f32 %v406, 0.35355338
        %411 = vrot.lane.b32.xlu0 %v406, 96
        %v412 = vpop.permute.xlu0 %411
        %vm413 = vcmask 64512
        %v415 = vsel %vm413, %v409, 0
        %v417 = vsel %vm413, %v412, 0
        %419 = vmatprep.subr.mxu0 0.0
        %420 = vmatpush1.xpose.msra.mxu0 0.0
        %421 = vmatprep.subr.mxu0 0.0
        %422 = vmatpush1.xpose.msra.mxu0 0.0
        %423 = vmatprep.subr.mxu0 0.0
        %424 = vmatpush1.xpose.msra.mxu0 0.0
        %425 = vmatprep.subr.mxu0 0.0
        %426 = vmatpush1.xpose.msra.mxu0 0.0
        %427 = vmatprep.subr.mxu0 0.0
        %428 = vmatpush1.xpose.msra.mxu0 0.0
        %429 = vmatprep.subr.mxu0 0.0
        %430 = vmatpush1.xpose.msra.mxu0 0.0
        %431 = vmatprep.subr.mxu0 0.0
        %432 = vmatpush1.xpose.msra.mxu0 0.0
        %433 = vmatprep.subr.mxu0 0.0
        %434 = vmatpush1.xpose.msra.mxu0 0.0
        %435 = vmatprep.subr.mxu0 0.0
        %436 = vmatpush1.xpose.msra.mxu0 0.0
        %437 = vmatprep.subr.mxu0 0.0
        %438 = vmatpush1.xpose.msra.mxu0 0.0
        %439 = vmatprep.subr.mxu0 0.0
        %440 = vmatpush1.xpose.msra.mxu0 0.0
        %441 = vmatprep.subr.mxu0 0.0
        %442 = vmatpush1.xpose.msra.mxu0 0.0
        %443 = vmatprep.subr.mxu0 0.0
        %444 = vmatpush1.xpose.msra.mxu0 0.0
        %445 = vmatprep.subr.mxu0 0.0
        %446 = vmatpush1.xpose.msra.mxu0 0.0
        %447 = vmatprep.subr.mxu0 0.0
        %448 = vmatpush1.xpose.msra.mxu0 0.0
        %449 = vmatprep.subr.mxu0 0.0
        %450 = vmatpush1.xpose.msra.mxu0 %v417
        %451 = vmatprep.subr.mxu0 0.0
        %452 = vmatpush2.xpose.msra.mxu0 0.0
        %453 = vmatprep.subr.mxu0 0.0
        %454 = vmatpush2.xpose.msra.mxu0 0.0
        %455 = vmatprep.subr.mxu0 0.0
        %456 = vmatpush2.xpose.msra.mxu0 0.0
        %457 = vmatprep.subr.mxu0 0.0
        %458 = vmatpush2.xpose.msra.mxu0 0.0
        %459 = vmatprep.subr.mxu0 0.0
        %460 = vmatpush2.xpose.msra.mxu0 0.0
        %461 = vmatprep.subr.mxu0 0.0
        %462 = vmatpush2.xpose.msra.mxu0 0.0
        %463 = vmatprep.subr.mxu0 0.0
        %464 = vmatpush2.xpose.msra.mxu0 0.0
        %465 = vmatprep.subr.mxu0 0.0
        %466 = vmatpush2.xpose.msra.mxu0 0.0
        %467 = vmatprep.subr.mxu0 0.0
        %468 = vmatpush2.xpose.msra.mxu0 0.0
        %469 = vmatprep.subr.mxu0 0.0
        %470 = vmatpush2.xpose.msra.mxu0 0.0
        %471 = vmatprep.subr.mxu0 0.0
        %472 = vmatpush2.xpose.msra.mxu0 0.0
        %473 = vmatprep.subr.mxu0 0.0
        %474 = vmatpush2.xpose.msra.mxu0 0.0
        %475 = vmatprep.subr.mxu0 0.0
        %476 = vmatpush2.xpose.msra.mxu0 0.0
        %477 = vmatprep.subr.mxu0 0.0
        %478 = vmatpush2.xpose.msra.mxu0 0.0
        %479 = vmatprep.subr.mxu0 0.0
        %480 = vmatpush2.xpose.msra.mxu0 0.0
        %481 = vmatprep.subr.mxu0 0.0
        %482 = vmatpush2.xpose.msra.mxu0 0.0
        %483 = vmatprep.mubr.f32.mxu0 0.0
        %484 = vmatmul.mubr.f32.gmra.mxu0 %v415
        %v485 = vpop.f32.mrf.mxu0
        %v486 = vadd.f32 0.0, %v485
        %v487 = vpop.f32.mrf.mxu0
        %488 = vdwg.mxu0
        %v489 = vsel %vm413, %v486, -inf
        %490 = vmax.xlane.f32.xlu0 %v489
        %v491 = vpop.xlane.xlu0 %490
        %v492 = vsub.f32 %v486, %v491
        %v493 = vmul.f32 %v492, 1.442695
        %v494 = vpow.pop %v493
        %v495 = vsel %vm413, %v494, 0.0
        %496 = vadd.xlane.f32.xlu0 %v495
        %v497 = vpop.xlane.xlu0 %496
        %498 = vrot.lane.b32.xlu0 %v406, 64
        %v499 = vpop.permute.xlu0 %498
        %v502 = vsel %vm413, %v494, 0
        %504 = vmatprep.subr.mxu0 0.0
        %505 = vmatpush1.msra.mxu0 0.0
        %506 = vmatprep.subr.mxu0 0.0
        %507 = vmatpush1.msra.mxu0 0.0
        %508 = vmatprep.subr.mxu0 0.0
        %509 = vmatpush1.msra.mxu0 0.0
        %510 = vmatprep.subr.mxu0 0.0
        %511 = vmatpush1.msra.mxu0 0.0
        %512 = vmatprep.subr.mxu0 0.0
        %513 = vmatpush1.msra.mxu0 0.0
        %514 = vmatprep.subr.mxu0 0.0
        %515 = vmatpush1.msra.mxu0 0.0
        %516 = vmatprep.subr.mxu0 0.0
        %517 = vmatpush1.msra.mxu0 0.0
        %518 = vmatprep.subr.mxu0 0.0
        %519 = vmatpush1.msra.mxu0 0.0
        %520 = vmatprep.subr.mxu0 0.0
        %521 = vmatpush1.msra.mxu0 0.0
        %522 = vmatprep.subr.mxu0 0.0
        %523 = vmatpush1.msra.mxu0 0.0
        %524 = vmatprep.subr.mxu0 0.0
        %525 = vmatpush1.msra.mxu0 0.0
        %526 = vmatprep.subr.mxu0 0.0
        %527 = vmatpush1.msra.mxu0 0.0
        %528 = vmatprep.subr.mxu0 0.0
        %529 = vmatpush1.msra.mxu0 0.0
        %530 = vmatprep.subr.mxu0 0.0
        %531 = vmatpush1.msra.mxu0 0.0
        %532 = vmatprep.subr.mxu0 0.0
        %533 = vmatpush1.msra.mxu0 0.0
        %534 = vmatprep.subr.mxu0 0.0
        %535 = vmatpush1.msra.mxu0 %v499
        %536 = vmatprep.subr.mxu0 0.0
        %537 = vmatpush2.msra.mxu0 0.0
        %538 = vmatprep.subr.mxu0 0.0
        %539 = vmatpush2.msra.mxu0 0.0
        %540 = vmatprep.subr.mxu0 0.0
        %541 = vmatpush2.msra.mxu0 0.0
        %542 = vmatprep.subr.mxu0 0.0
        %543 = vmatpush2.msra.mxu0 0.0
        %544 = vmatprep.subr.mxu0 0.0
        %545 = vmatpush2.msra.mxu0 0.0
        %546 = vmatprep.subr.mxu0 0.0
        %547 = vmatpush2.msra.mxu0 0.0
        %548 = vmatprep.subr.mxu0 0.0
        %549 = vmatpush2.msra.mxu0 0.0
        %550 = vmatprep.subr.mxu0 0.0
        %551 = vmatpush2.msra.mxu0 0.0
        %552 = vmatprep.subr.mxu0 0.0
        %553 = vmatpush2.msra.mxu0 0.0
        %554 = vmatprep.subr.mxu0 0.0
        %555 = vmatpush2.msra.mxu0 0.0
        %556 = vmatprep.subr.mxu0 0.0
        %557 = vmatpush2.msra.mxu0 0.0
        %558 = vmatprep.subr.mxu0 0.0
        %559 = vmatpush2.msra.mxu0 0.0
        %560 = vmatprep.subr.mxu0 0.0
        %561 = vmatpush2.msra.mxu0 0.0
        %562 = vmatprep.subr.mxu0 0.0
        %563 = vmatpush2.msra.mxu0 0.0
        %564 = vmatprep.subr.mxu0 0.0
        %565 = vmatpush2.msra.mxu0 0.0
        %566 = vmatprep.subr.mxu0 0.0
        %567 = vmatpush2.msra.mxu0 0.0
        %568 = vmatprep.mubr.f32.mxu0 0.0
        %569 = vmatmul.mubr.f32.gmra.mxu0 %v502
        %v570 = vpop.f32.mrf.mxu0
        %v571 = vadd.f32 0.0, %v570
        %v572 = vpop.f32.mrf.mxu0
        %573 = vdwg.mxu0
        %v574 = vrcp.pop %v497
        %v575 = vmul.f32 1.0, %v574
        %v576 = vmul.f32 %v571, %v575
        %577 = vrot.lane.b32.xlu0 %v409, 120
        %v578 = vpop.permute.xlu0 %577
        %579 = vrot.lane.b32.xlu0 %v406, 88
        %v580 = vpop.permute.xlu0 %579
        %v581 = vsel %vm413, %v578, 0
        %v583 = vsel %vm413, %v580, 0
        %585 = vmatprep.subr.mxu0 0.0
        %586 = vmatpush1.xpose.msra.mxu0 0.0
        %587 = vmatprep.subr.mxu0 0.0
        %588 = vmatpush1.xpose.msra.mxu0 0.0
        %589 = vmatprep.subr.mxu0 0.0
        %590 = vmatpush1.xpose.msra.mxu0 0.0
        %591 = vmatprep.subr.mxu0 0.0
        %592 = vmatpush1.xpose.msra.mxu0 0.0
        %593 = vmatprep.subr.mxu0 0.0
        %594 = vmatpush1.xpose.msra.mxu0 0.0
        %595 = vmatprep.subr.mxu0 0.0
        %596 = vmatpush1.xpose.msra.mxu0 0.0
        %597 = vmatprep.subr.mxu0 0.0
        %598 = vmatpush1.xpose.msra.mxu0 0.0
        %599 = vmatprep.subr.mxu0 0.0
        %600 = vmatpush1.xpose.msra.mxu0 0.0
        %601 = vmatprep.subr.mxu0 0.0
        %602 = vmatpush1.xpose.msra.mxu0 0.0
        %603 = vmatprep.subr.mxu0 0.0
        %604 = vmatpush1.xpose.msra.mxu0 0.0
        %605 = vmatprep.subr.mxu0 0.0
        %606 = vmatpush1.xpose.msra.mxu0 0.0
        %607 = vmatprep.subr.mxu0 0.0
        %608 = vmatpush1.xpose.msra.mxu0 0.0
        %609 = vmatprep.subr.mxu0 0.0
        %610 = vmatpush1.xpose.msra.mxu0 0.0
        %611 = vmatprep.subr.mxu0 0.0
        %612 = vmatpush1.xpose.msra.mxu0 0.0
        %613 = vmatprep.subr.mxu0 0.0
        %614 = vmatpush1.xpose.msra.mxu0 0.0
        %615 = vmatprep.subr.mxu0 0.0
        %616 = vmatpush1.xpose.msra.mxu0 %v583
        %617 = vmatprep.subr.mxu0 0.0
        %618 = vmatpush2.xpose.msra.mxu0 0.0
        %619 = vmatprep.subr.mxu0 0.0
        %620 = vmatpush2.xpose.msra.mxu0 0.0
        %621 = vmatprep.subr.mxu0 0.0
        %622 = vmatpush2.xpose.msra.mxu0 0.0
        %623 = vmatprep.subr.mxu0 0.0
        %624 = vmatpush2.xpose.msra.mxu0 0.0
        %625 = vmatprep.subr.mxu0 0.0
        %626 = vmatpush2.xpose.msra.mxu0 0.0
        %627 = vmatprep.subr.mxu0 0.0
        %628 = vmatpush2.xpose.msra.mxu0 0.0
        %629 = vmatprep.subr.mxu0 0.0
        %630 = vmatpush2.xpose.msra.mxu0 0.0
        %631 = vmatprep.subr.mxu0 0.0
        %632 = vmatpush2.xpose.msra.mxu0 0.0
        %633 = vmatprep.subr.mxu0 0.0
        %634 = vmatpush2.xpose.msra.mxu0 0.0
        %635 = vmatprep.subr.mxu0 0.0
        %636 = vmatpush2.xpose.msra.mxu0 0.0
        %637 = vmatprep.subr.mxu0 0.0
        %638 = vmatpush2.xpose.msra.mxu0 0.0
        %639 = vmatprep.subr.mxu0 0.0
        %640 = vmatpush2.xpose.msra.mxu0 0.0
        %641 = vmatprep.subr.mxu0 0.0
        %642 = vmatpush2.xpose.msra.mxu0 0.0
        %643 = vmatprep.subr.mxu0 0.0
        %644 = vmatpush2.xpose.msra.mxu0 0.0
        %645 = vmatprep.subr.mxu0 0.0
        %646 = vmatpush2.xpose.msra.mxu0 0.0
        %647 = vmatprep.subr.mxu0 0.0
        %648 = vmatpush2.xpose.msra.mxu0 0.0
        %649 = vmatprep.mubr.f32.mxu0 0.0
        %650 = vmatmul.mubr.f32.gmra.mxu0 %v581
        %v651 = vpop.f32.mrf.mxu0
        %v652 = vadd.f32 0.0, %v651
        %v653 = vpop.f32.mrf.mxu0
        %654 = vdwg.mxu0
        %v655 = vsel %vm413, %v652, -inf
        %656 = vmax.xlane.f32.xlu0 %v655
        %v657 = vpop.xlane.xlu0 %656
        %v658 = vsub.f32 %v652, %v657
        %v659 = vmul.f32 %v658, 1.442695
        %v660 = vpow.pop %v659
        %v661 = vsel %vm413, %v660, 0.0
        %662 = vadd.xlane.f32.xlu0 %v661
        %v663 = vpop.xlane.xlu0 %662
        %664 = vrot.lane.b32.xlu0 %v406, 56
        %v665 = vpop.permute.xlu0 %664
        %v668 = vsel %vm413, %v660, 0
        %670 = vmatprep.subr.mxu0 0.0
        %671 = vmatpush1.msra.mxu0 0.0
        %672 = vmatprep.subr.mxu0 0.0
        %673 = vmatpush1.msra.mxu0 0.0
        %674 = vmatprep.subr.mxu0 0.0
        %675 = vmatpush1.msra.mxu0 0.0
        %676 = vmatprep.subr.mxu0 0.0
        %677 = vmatpush1.msra.mxu0 0.0
        %678 = vmatprep.subr.mxu0 0.0
        %679 = vmatpush1.msra.mxu0 0.0
        %680 = vmatprep.subr.mxu0 0.0
        %681 = vmatpush1.msra.mxu0 0.0
        %682 = vmatprep.subr.mxu0 0.0
        %683 = vmatpush1.msra.mxu0 0.0
        %684 = vmatprep.subr.mxu0 0.0
        %685 = vmatpush1.msra.mxu0 0.0
        %686 = vmatprep.subr.mxu0 0.0
        %687 = vmatpush1.msra.mxu0 0.0
        %688 = vmatprep.subr.mxu0 0.0
        %689 = vmatpush1.msra.mxu0 0.0
        %690 = vmatprep.subr.mxu0 0.0
        %691 = vmatpush1.msra.mxu0 0.0
        %692 = vmatprep.subr.mxu0 0.0
        %693 = vmatpush1.msra.mxu0 0.0
        %694 = vmatprep.subr.mxu0 0.0
        %695 = vmatpush1.msra.mxu0 0.0
        %696 = vmatprep.subr.mxu0 0.0
        %697 = vmatpush1.msra.mxu0 0.0
        %698 = vmatprep.subr.mxu0 0.0
        %699 = vmatpush1.msra.mxu0 0.0
        %700 = vmatprep.subr.mxu0 0.0
        %701 = vmatpush1.msra.mxu0 %v665
        %702 = vmatprep.subr.mxu0 0.0
        %703 = vmatpush2.msra.mxu0 0.0
        %704 = vmatprep.subr.mxu0 0.0
        %705 = vmatpush2.msra.mxu0 0.0
        %706 = vmatprep.subr.mxu0 0.0
        %707 = vmatpush2.msra.mxu0 0.0
        %708 = vmatprep.subr.mxu0 0.0
        %709 = vmatpush2.msra.mxu0 0.0
        %710 = vmatprep.subr.mxu0 0.0
        %711 = vmatpush2.msra.mxu0 0.0
        %712 = vmatprep.subr.mxu0 0.0
        %713 = vmatpush2.msra.mxu0 0.0
        %714 = vmatprep.subr.mxu0 0.0
        %715 = vmatpush2.msra.mxu0 0.0
        %716 = vmatprep.subr.mxu0 0.0
        %717 = vmatpush2.msra.mxu0 0.0
        %718 = vmatprep.subr.mxu0 0.0
        %719 = vmatpush2.msra.mxu0 0.0
        %720 = vmatprep.subr.mxu0 0.0
        %721 = vmatpush2.msra.mxu0 0.0
        %722 = vmatprep.subr.mxu0 0.0
        %723 = vmatpush2.msra.mxu0 0.0
        %724 = vmatprep.subr.mxu0 0.0
        %725 = vmatpush2.msra.mxu0 0.0
        %726 = vmatprep.subr.mxu0 0.0
        %727 = vmatpush2.msra.mxu0 0.0
        %728 = vmatprep.subr.mxu0 0.0
        %729 = vmatpush2.msra.mxu0 0.0
        %730 = vmatprep.subr.mxu0 0.0
        %731 = vmatpush2.msra.mxu0 0.0
        %732 = vmatprep.subr.mxu0 0.0
        %733 = vmatpush2.msra.mxu0 0.0
        %734 = vmatprep.mubr.f32.mxu0 0.0
        %735 = vmatmul.mubr.f32.gmra.mxu0 %v668
        %v736 = vpop.f32.mrf.mxu0
        %v737 = vadd.f32 0.0, %v736
        %v738 = vpop.f32.mrf.mxu0
        %739 = vdwg.mxu0
        %v740 = vrcp.pop %v663
        %v741 = vmul.f32 1.0, %v740
        %v742 = vmul.f32 %v737, %v741
        %743 = vrot.lane.b32.xlu0 %v409, 112
        %v744 = vpop.permute.xlu0 %743
        %745 = vrot.lane.b32.xlu0 %v406, 80
        %v746 = vpop.permute.xlu0 %745
        %v747 = vsel %vm413, %v744, 0
        %v749 = vsel %vm413, %v746, 0
        %751 = vmatprep.subr.mxu0 0.0
        %752 = vmatpush1.xpose.msra.mxu0 0.0
        %753 = vmatprep.subr.mxu0 0.0
        %754 = vmatpush1.xpose.msra.mxu0 0.0
        %755 = vmatprep.subr.mxu0 0.0
        %756 = vmatpush1.xpose.msra.mxu0 0.0
        %757 = vmatprep.subr.mxu0 0.0
        %758 = vmatpush1.xpose.msra.mxu0 0.0
        %759 = vmatprep.subr.mxu0 0.0
        %760 = vmatpush1.xpose.msra.mxu0 0.0
        %761 = vmatprep.subr.mxu0 0.0
        %762 = vmatpush1.xpose.msra.mxu0 0.0
        %763 = vmatprep.subr.mxu0 0.0
        %764 = vmatpush1.xpose.msra.mxu0 0.0
        %765 = vmatprep.subr.mxu0 0.0
        %766 = vmatpush1.xpose.msra.mxu0 0.0
        %767 = vmatprep.subr.mxu0 0.0
        %768 = vmatpush1.xpose.msra.mxu0 0.0
        %769 = vmatprep.subr.mxu0 0.0
        %770 = vmatpush1.xpose.msra.mxu0 0.0
        %771 = vmatprep.subr.mxu0 0.0
        %772 = vmatpush1.xpose.msra.mxu0 0.0
        %773 = vmatprep.subr.mxu0 0.0
        %774 = vmatpush1.xpose.msra.mxu0 0.0
        %775 = vmatprep.subr.mxu0 0.0
        %776 = vmatpush1.xpose.msra.mxu0 0.0
        %777 = vmatprep.subr.mxu0 0.0
        %778 = vmatpush1.xpose.msra.mxu0 0.0
        %779 = vmatprep.subr.mxu0 0.0
        %780 = vmatpush1.xpose.msra.mxu0 0.0
        %781 = vmatprep.subr.mxu0 0.0
        %782 = vmatpush1.xpose.msra.mxu0 %v749
        %783 = vmatprep.subr.mxu0 0.0
        %784 = vmatpush2.xpose.msra.mxu0 0.0
        %785 = vmatprep.subr.mxu0 0.0
        %786 = vmatpush2.xpose.msra.mxu0 0.0
        %787 = vmatprep.subr.mxu0 0.0
        %788 = vmatpush2.xpose.msra.mxu0 0.0
        %789 = vmatprep.subr.mxu0 0.0
        %790 = vmatpush2.xpose.msra.mxu0 0.0
        %791 = vmatprep.subr.mxu0 0.0
        %792 = vmatpush2.xpose.msra.mxu0 0.0
        %793 = vmatprep.subr.mxu0 0.0
        %794 = vmatpush2.xpose.msra.mxu0 0.0
        %795 = vmatprep.subr.mxu0 0.0
        %796 = vmatpush2.xpose.msra.mxu0 0.0
        %797 = vmatprep.subr.mxu0 0.0
        %798 = vmatpush2.xpose.msra.mxu0 0.0
        %799 = vmatprep.subr.mxu0 0.0
        %800 = vmatpush2.xpose.msra.mxu0 0.0
        %801 = vmatprep.subr.mxu0 0.0
        %802 = vmatpush2.xpose.msra.mxu0 0.0
        %803 = vmatprep.subr.mxu0 0.0
        %804 = vmatpush2.xpose.msra.mxu0 0.0
        %805 = vmatprep.subr.mxu0 0.0
        %806 = vmatpush2.xpose.msra.mxu0 0.0
        %807 = vmatprep.subr.mxu0 0.0
        %808 = vmatpush2.xpose.msra.mxu0 0.0
        %809 = vmatprep.subr.mxu0 0.0
        %810 = vmatpush2.xpose.msra.mxu0 0.0
        %811 = vmatprep.subr.mxu0 0.0
        %812 = vmatpush2.xpose.msra.mxu0 0.0
        %813 = vmatprep.subr.mxu0 0.0
        %814 = vmatpush2.xpose.msra.mxu0 0.0
        %815 = vmatprep.mubr.f32.mxu0 0.0
        %816 = vmatmul.mubr.f32.gmra.mxu0 %v747
        %v817 = vpop.f32.mrf.mxu0
        %v818 = vadd.f32 0.0, %v817
        %v819 = vpop.f32.mrf.mxu0
        %820 = vdwg.mxu0
        %v821 = vsel %vm413, %v818, -inf
        %822 = vmax.xlane.f32.xlu0 %v821
        %v823 = vpop.xlane.xlu0 %822
        %v824 = vsub.f32 %v818, %v823
        %v825 = vmul.f32 %v824, 1.442695
        %v826 = vpow.pop %v825
        %v827 = vsel %vm413, %v826, 0.0
        %828 = vadd.xlane.f32.xlu0 %v827
        %v829 = vpop.xlane.xlu0 %828
        %830 = vrot.lane.b32.xlu0 %v406, 48
        %v831 = vpop.permute.xlu0 %830
        %v834 = vsel %vm413, %v826, 0
        %836 = vmatprep.subr.mxu0 0.0
        %837 = vmatpush1.msra.mxu0 0.0
        %838 = vmatprep.subr.mxu0 0.0
        %839 = vmatpush1.msra.mxu0 0.0
        %840 = vmatprep.subr.mxu0 0.0
        %841 = vmatpush1.msra.mxu0 0.0
        %842 = vmatprep.subr.mxu0 0.0
        %843 = vmatpush1.msra.mxu0 0.0
        %844 = vmatprep.subr.mxu0 0.0
        %845 = vmatpush1.msra.mxu0 0.0
        %846 = vmatprep.subr.mxu0 0.0
        %847 = vmatpush1.msra.mxu0 0.0
        %848 = vmatprep.subr.mxu0 0.0
        %849 = vmatpush1.msra.mxu0 0.0
        %850 = vmatprep.subr.mxu0 0.0
        %851 = vmatpush1.msra.mxu0 0.0
        %852 = vmatprep.subr.mxu0 0.0
        %853 = vmatpush1.msra.mxu0 0.0
        %854 = vmatprep.subr.mxu0 0.0
        %855 = vmatpush1.msra.mxu0 0.0
        %856 = vmatprep.subr.mxu0 0.0
        %857 = vmatpush1.msra.mxu0 0.0
        %858 = vmatprep.subr.mxu0 0.0
        %859 = vmatpush1.msra.mxu0 0.0
        %860 = vmatprep.subr.mxu0 0.0
        %861 = vmatpush1.msra.mxu0 0.0
        %862 = vmatprep.subr.mxu0 0.0
        %863 = vmatpush1.msra.mxu0 0.0
        %864 = vmatprep.subr.mxu0 0.0
        %865 = vmatpush1.msra.mxu0 0.0
        %866 = vmatprep.subr.mxu0 0.0
        %867 = vmatpush1.msra.mxu0 %v831
        %868 = vmatprep.subr.mxu0 0.0
        %869 = vmatpush2.msra.mxu0 0.0
        %870 = vmatprep.subr.mxu0 0.0
        %871 = vmatpush2.msra.mxu0 0.0
        %872 = vmatprep.subr.mxu0 0.0
        %873 = vmatpush2.msra.mxu0 0.0
        %874 = vmatprep.subr.mxu0 0.0
        %875 = vmatpush2.msra.mxu0 0.0
        %876 = vmatprep.subr.mxu0 0.0
        %877 = vmatpush2.msra.mxu0 0.0
        %878 = vmatprep.subr.mxu0 0.0
        %879 = vmatpush2.msra.mxu0 0.0
        %880 = vmatprep.subr.mxu0 0.0
        %881 = vmatpush2.msra.mxu0 0.0
        %882 = vmatprep.subr.mxu0 0.0
        %883 = vmatpush2.msra.mxu0 0.0
        %884 = vmatprep.subr.mxu0 0.0
        %885 = vmatpush2.msra.mxu0 0.0
        %886 = vmatprep.subr.mxu0 0.0
        %887 = vmatpush2.msra.mxu0 0.0
        %888 = vmatprep.subr.mxu0 0.0
        %889 = vmatpush2.msra.mxu0 0.0
        %890 = vmatprep.subr.mxu0 0.0
        %891 = vmatpush2.msra.mxu0 0.0
        %892 = vmatprep.subr.mxu0 0.0
        %893 = vmatpush2.msra.mxu0 0.0
        %894 = vmatprep.subr.mxu0 0.0
        %895 = vmatpush2.msra.mxu0 0.0
        %896 = vmatprep.subr.mxu0 0.0
        %897 = vmatpush2.msra.mxu0 0.0
        %898 = vmatprep.subr.mxu0 0.0
        %899 = vmatpush2.msra.mxu0 0.0
        %900 = vmatprep.mubr.f32.mxu0 0.0
        %901 = vmatmul.mubr.f32.gmra.mxu0 %v834
        %v902 = vpop.f32.mrf.mxu0
        %v903 = vadd.f32 0.0, %v902
        %v904 = vpop.f32.mrf.mxu0
        %905 = vdwg.mxu0
        %v906 = vrcp.pop %v829
        %v907 = vmul.f32 1.0, %v906
        %v908 = vmul.f32 %v903, %v907
        %909 = vrot.lane.b32.xlu0 %v409, 104
        %v910 = vpop.permute.xlu0 %909
        %911 = vrot.lane.b32.xlu0 %v406, 72
        %v912 = vpop.permute.xlu0 %911
        %v913 = vsel %vm413, %v910, 0
        %v915 = vsel %vm413, %v912, 0
        %917 = vmatprep.subr.mxu0 0.0
        %918 = vmatpush1.xpose.msra.mxu0 0.0
        %919 = vmatprep.subr.mxu0 0.0
        %920 = vmatpush1.xpose.msra.mxu0 0.0
        %921 = vmatprep.subr.mxu0 0.0
        %922 = vmatpush1.xpose.msra.mxu0 0.0
        %923 = vmatprep.subr.mxu0 0.0
        %924 = vmatpush1.xpose.msra.mxu0 0.0
        %925 = vmatprep.subr.mxu0 0.0
        %926 = vmatpush1.xpose.msra.mxu0 0.0
        %927 = vmatprep.subr.mxu0 0.0
        %928 = vmatpush1.xpose.msra.mxu0 0.0
        %929 = vmatprep.subr.mxu0 0.0
        %930 = vmatpush1.xpose.msra.mxu0 0.0
        %931 = vmatprep.subr.mxu0 0.0
        %932 = vmatpush1.xpose.msra.mxu0 0.0
        %933 = vmatprep.subr.mxu0 0.0
        %934 = vmatpush1.xpose.msra.mxu0 0.0
        %935 = vmatprep.subr.mxu0 0.0
        %936 = vmatpush1.xpose.msra.mxu0 0.0
        %937 = vmatprep.subr.mxu0 0.0
        %938 = vmatpush1.xpose.msra.mxu0 0.0
        %939 = vmatprep.subr.mxu0 0.0
        %940 = vmatpush1.xpose.msra.mxu0 0.0
        %941 = vmatprep.subr.mxu0 0.0
        %942 = vmatpush1.xpose.msra.mxu0 0.0
        %943 = vmatprep.subr.mxu0 0.0
        %944 = vmatpush1.xpose.msra.mxu0 0.0
        %945 = vmatprep.subr.mxu0 0.0
        %946 = vmatpush1.xpose.msra.mxu0 0.0
        %947 = vmatprep.subr.mxu0 0.0
        %948 = vmatpush1.xpose.msra.mxu0 %v915
        %949 = vmatprep.subr.mxu0 0.0
        %950 = vmatpush2.xpose.msra.mxu0 0.0
        %951 = vmatprep.subr.mxu0 0.0
        %952 = vmatpush2.xpose.msra.mxu0 0.0
        %953 = vmatprep.subr.mxu0 0.0
        %954 = vmatpush2.xpose.msra.mxu0 0.0
        %955 = vmatprep.subr.mxu0 0.0
        %956 = vmatpush2.xpose.msra.mxu0 0.0
        %957 = vmatprep.subr.mxu0 0.0
        %958 = vmatpush2.xpose.msra.mxu0 0.0
        %959 = vmatprep.subr.mxu0 0.0
        %960 = vmatpush2.xpose.msra.mxu0 0.0
        %961 = vmatprep.subr.mxu0 0.0
        %962 = vmatpush2.xpose.msra.mxu0 0.0
        %963 = vmatprep.subr.mxu0 0.0
        %964 = vmatpush2.xpose.msra.mxu0 0.0
        %965 = vmatprep.subr.mxu0 0.0
        %966 = vmatpush2.xpose.msra.mxu0 0.0
        %967 = vmatprep.subr.mxu0 0.0
        %968 = vmatpush2.xpose.msra.mxu0 0.0
        %969 = vmatprep.subr.mxu0 0.0
        %970 = vmatpush2.xpose.msra.mxu0 0.0
        %971 = vmatprep.subr.mxu0 0.0
        %972 = vmatpush2.xpose.msra.mxu0 0.0
        %973 = vmatprep.subr.mxu0 0.0
        %974 = vmatpush2.xpose.msra.mxu0 0.0
        %975 = vmatprep.subr.mxu0 0.0
        %976 = vmatpush2.xpose.msra.mxu0 0.0
        %977 = vmatprep.subr.mxu0 0.0
        %978 = vmatpush2.xpose.msra.mxu0 0.0
        %979 = vmatprep.subr.mxu0 0.0
        %980 = vmatpush2.xpose.msra.mxu0 0.0
        %981 = vmatprep.mubr.f32.mxu0 0.0
        %982 = vmatmul.mubr.f32.gmra.mxu0 %v913
        %v983 = vpop.f32.mrf.mxu0
        %v984 = vadd.f32 0.0, %v983
        %v985 = vpop.f32.mrf.mxu0
        %986 = vdwg.mxu0
        %v987 = vsel %vm413, %v984, -inf
        %988 = vmax.xlane.f32.xlu0 %v987
        %v989 = vpop.xlane.xlu0 %988
        %v990 = vsub.f32 %v984, %v989
        %v991 = vmul.f32 %v990, 1.442695
        %v992 = vpow.pop %v991
        %v993 = vsel %vm413, %v992, 0.0
        %994 = vadd.xlane.f32.xlu0 %v993
        %v995 = vpop.xlane.xlu0 %994
        %996 = vrot.lane.b32.xlu0 %v406, 40
        %v997 = vpop.permute.xlu0 %996
        %v1000 = vsel %vm413, %v992, 0
        %1002 = vmatprep.subr.mxu0 0.0
        %1003 = vmatpush1.msra.mxu0 0.0
        %1004 = vmatprep.subr.mxu0 0.0
        %1005 = vmatpush1.msra.mxu0 0.0
        %1006 = vmatprep.subr.mxu0 0.0
        %1007 = vmatpush1.msra.mxu0 0.0
        %1008 = vmatprep.subr.mxu0 0.0
        %1009 = vmatpush1.msra.mxu0 0.0
        %1010 = vmatprep.subr.mxu0 0.0
        %1011 = vmatpush1.msra.mxu0 0.0
        %1012 = vmatprep.subr.mxu0 0.0
        %1013 = vmatpush1.msra.mxu0 0.0
        %1014 = vmatprep.subr.mxu0 0.0
        %1015 = vmatpush1.msra.mxu0 0.0
        %1016 = vmatprep.subr.mxu0 0.0
        %1017 = vmatpush1.msra.mxu0 0.0
        %1018 = vmatprep.subr.mxu0 0.0
        %1019 = vmatpush1.msra.mxu0 0.0
        %1020 = vmatprep.subr.mxu0 0.0
        %1021 = vmatpush1.msra.mxu0 0.0
        %1022 = vmatprep.subr.mxu0 0.0
        %1023 = vmatpush1.msra.mxu0 0.0
        %1024 = vmatprep.subr.mxu0 0.0
        %1025 = vmatpush1.msra.mxu0 0.0
        %1026 = vmatprep.subr.mxu0 0.0
        %1027 = vmatpush1.msra.mxu0 0.0
        %1028 = vmatprep.subr.mxu0 0.0
        %1029 = vmatpush1.msra.mxu0 0.0
        %1030 = vmatprep.subr.mxu0 0.0
        %1031 = vmatpush1.msra.mxu0 0.0
        %1032 = vmatprep.subr.mxu0 0.0
        %1033 = vmatpush1.msra.mxu0 %v997
        %1034 = vmatprep.subr.mxu0 0.0
        %1035 = vmatpush2.msra.mxu0 0.0
        %1036 = vmatprep.subr.mxu0 0.0
        %1037 = vmatpush2.msra.mxu0 0.0
        %1038 = vmatprep.subr.mxu0 0.0
        %1039 = vmatpush2.msra.mxu0 0.0
        %1040 = vmatprep.subr.mxu0 0.0
        %1041 = vmatpush2.msra.mxu0 0.0
        %1042 = vmatprep.subr.mxu0 0.0
        %1043 = vmatpush2.msra.mxu0 0.0
        %1044 = vmatprep.subr.mxu0 0.0
        %1045 = vmatpush2.msra.mxu0 0.0
        %1046 = vmatprep.subr.mxu0 0.0
        %1047 = vmatpush2.msra.mxu0 0.0
        %1048 = vmatprep.subr.mxu0 0.0
        %1049 = vmatpush2.msra.mxu0 0.0
        %1050 = vmatprep.subr.mxu0 0.0
        %1051 = vmatpush2.msra.mxu0 0.0
        %1052 = vmatprep.subr.mxu0 0.0
        %1053 = vmatpush2.msra.mxu0 0.0
        %1054 = vmatprep.subr.mxu0 0.0
        %1055 = vmatpush2.msra.mxu0 0.0
        %1056 = vmatprep.subr.mxu0 0.0
        %1057 = vmatpush2.msra.mxu0 0.0
        %1058 = vmatprep.subr.mxu0 0.0
        %1059 = vmatpush2.msra.mxu0 0.0
        %1060 = vmatprep.subr.mxu0 0.0
        %1061 = vmatpush2.msra.mxu0 0.0
        %1062 = vmatprep.subr.mxu0 0.0
        %1063 = vmatpush2.msra.mxu0 0.0
        %1064 = vmatprep.subr.mxu0 0.0
        %1065 = vmatpush2.msra.mxu0 0.0
        %1066 = vmatprep.mubr.f32.mxu0 0.0
        %1067 = vmatmul.mubr.f32.gmra.mxu0 %v1000
        %v1068 = vpop.f32.mrf.mxu0
        %v1069 = vadd.f32 0.0, %v1068
        %v1070 = vpop.f32.mrf.mxu0
        %1071 = vdwg.mxu0
        %v1072 = vrcp.pop %v995
        %v1073 = vmul.f32 1.0, %v1072
        %v1074 = vmul.f32 %v1069, %v1073
        %1076 = vrot.lane.b32.xlu0 %v742, 8
        %v1077 = vpop.permute.xlu0 %1076
        %1080 = vrot.lane.b32.xlu0 %v908, 16
        %v1081 = vpop.permute.xlu0 %1080
        %1084 = vrot.lane.b32.xlu0 %v1074, 24
        %v1085 = vpop.permute.xlu0 %1084
        %v1087 = vsel %vm413, %v576, %v1077
        %vm1088 = vcmask 130048
        %v1089 = vsel %vm1088, %v1087, %v1081
        %vm1090 = vcmask 195584
        %v1091 = vsel %vm1090, %v1089, %v1085
        %v1092 = vld [vmem:[#allocation7] sm:$0xff]
        %v1093 = vld [vmem:[#allocation7 + $0x8] sm:$0xff]
        %v1094 = vld [vmem:[#allocation7 + $0x10] sm:$0xff]
        %v1095 = vld [vmem:[#allocation7 + $0x18] sm:$0xff]
        %v1096 = vld [vmem:[%s4] sm:$0x1]
        %v1098 = vlaneseq
        %v1099 = vshrl.u32 %v1098, 7
        %v1100 = vsub.s32 0, %v1099
        %v1101 = vrot.slane %v1096, %v1100
        %v1104 = vsel %vm335, %v1091, 0
        %1106 = vmatprep.subr.mxu0 0.0
        %1107 = vmatpush1.msra.mxu0 0.0
        %1108 = vmatprep.subr.mxu0 0.0
        %1109 = vmatpush1.msra.mxu0 0.0
        %1110 = vmatprep.subr.mxu0 0.0
        %1111 = vmatpush1.msra.mxu0 0.0
        %1112 = vmatprep.subr.mxu0 0.0
        %1113 = vmatpush1.msra.mxu0 0.0
        %1114 = vmatprep.subr.mxu0 0.0
        %1115 = vmatpush1.msra.mxu0 0.0
        %1116 = vmatprep.subr.mxu0 0.0
        %1117 = vmatpush1.msra.mxu0 0.0
        %1118 = vmatprep.subr.mxu0 0.0
        %1119 = vmatpush1.msra.mxu0 0.0
        %1120 = vmatprep.subr.mxu0 0.0
        %1121 = vmatpush1.msra.mxu0 0.0
        %1122 = vmatprep.subr.mxu0 0.0
        %1123 = vmatpush1.msra.mxu0 0.0
        %1124 = vmatprep.subr.mxu0 0.0
        %1125 = vmatpush1.msra.mxu0 0.0
        %1126 = vmatprep.subr.mxu0 0.0
        %1127 = vmatpush1.msra.mxu0 0.0
        %1128 = vmatprep.subr.mxu0 0.0
        %1129 = vmatpush1.msra.mxu0 0.0
        %1130 = vmatprep.subr.mxu0 0.0
        %1131 = vmatpush1.msra.mxu0 %v1095
        %1132 = vmatprep.subr.mxu0 0.0
        %1133 = vmatpush1.msra.mxu0 %v1094
        %1134 = vmatprep.subr.mxu0 0.0
        %1135 = vmatpush1.msra.mxu0 %v1093
        %1136 = vmatprep.subr.mxu0 0.0
        %1137 = vmatpush1.msra.mxu0 %v1092
        %1138 = vmatprep.subr.mxu0 0.0
        %1139 = vmatpush2.msra.mxu0 0.0
        %1140 = vmatprep.subr.mxu0 0.0
        %1141 = vmatpush2.msra.mxu0 0.0
        %1142 = vmatprep.subr.mxu0 0.0
        %1143 = vmatpush2.msra.mxu0 0.0
        %1144 = vmatprep.subr.mxu0 0.0
        %1145 = vmatpush2.msra.mxu0 0.0
        %1146 = vmatprep.subr.mxu0 0.0
        %1147 = vmatpush2.msra.mxu0 0.0
        %1148 = vmatprep.subr.mxu0 0.0
        %1149 = vmatpush2.msra.mxu0 0.0
        %1150 = vmatprep.subr.mxu0 0.0
        %1151 = vmatpush2.msra.mxu0 0.0
        %1152 = vmatprep.subr.mxu0 0.0
        %1153 = vmatpush2.msra.mxu0 0.0
        %1154 = vmatprep.subr.mxu0 0.0
        %1155 = vmatpush2.msra.mxu0 0.0
        %1156 = vmatprep.subr.mxu0 0.0
        %1157 = vmatpush2.msra.mxu0 0.0
        %1158 = vmatprep.subr.mxu0 0.0
        %1159 = vmatpush2.msra.mxu0 0.0
        %1160 = vmatprep.subr.mxu0 0.0
        %1161 = vmatpush2.msra.mxu0 0.0
        %1162 = vmatprep.subr.mxu0 0.0
        %1163 = vmatpush2.msra.mxu0 0.0
        %1164 = vmatprep.subr.mxu0 0.0
        %1165 = vmatpush2.msra.mxu0 0.0
        %1166 = vmatprep.subr.mxu0 0.0
        %1167 = vmatpush2.msra.mxu0 0.0
        %1168 = vmatprep.subr.mxu0 0.0
        %1169 = vmatpush2.msra.mxu0 0.0
        %1170 = vmatprep.mubr.f32.mxu0 0.0
        %1171 = vmatmul.mubr.f32.gmra.mxu0 %v1104
        %v1172 = vpop.f32.mrf.mxu0
        %v1173 = vadd.f32 %v1101, %v1172
        %v1174 = vpop.f32.mrf.mxu0
        %1175 = vdwg.mxu0
        %v1176 = vadd.f32 %v1173, %v323
        %v1177 = vld [vmem:[%s5] sm:$0x1]
        %v1178 = vld [vmem:[%s6] sm:$0x1]
        %v1179 = vsel %vm335, %v1176, 0.0
        %1180 = vadd.xlane.f32.xlu0 %v1179
        %v1181 = vpop.xlane.xlu0 %1180
        %v1182 = vrcp.pop 32.0
        %v1183 = vmul.f32 %v1181, %v1182
        %v1184 = vsub.f32 %v1176, %v1183
        %v1185 = vmul.f32 %v1184, %v1184
        %v1186 = vsel %vm335, %v1185, 0.0
        %1187 = vadd.xlane.f32.xlu0 %v1186
        %v1188 = vpop.xlane.xlu0 %1187
        %v1189 = vmul.f32 %v1188, %v1182
        %v1190 = vadd.f32 %v1189, 1e-12
        %v1191 = vrsqrt.pop %v1190
        %v1192 = vmul.f32 %v1184, %v1191
        %v1194 = vlaneseq
        %v1195 = vshrl.u32 %v1194, 7
        %v1196 = vsub.s32 0, %v1195
        %v1197 = vrot.slane %v1177, %v1196
        %v1199 = vmul.f32 %v1192, %v1197
        %v1201 = vlaneseq
        %v1202 = vshrl.u32 %v1201, 7
        %v1203 = vsub.s32 0, %v1202
        %v1204 = vrot.slane %v1178, %v1203
        %v1206 = vadd.f32 %v1199, %v1204
        %1207 = vst.msk [vmem:[%s322] sm:$0xff] %vm335, %v1206
        %s1208 = sand.u32 %s185, 1
        %s1209 = scalar_lea.sflag [#allocation4], %s1208
        %s1210 = sand.u32 %s185, 1
        %s1211 = smul.addr %s1210, 8
        %s1212 = scalar_lea.vmem [#allocation8], %s1211
        // Predicated region
        $region61: #{tpu_custom_call.1} parent=47 // pred_check
          %p1213 = pneg %p195
        $region62: #{tpu_custom_call.1} parent=47 // pred_check_branch
          %1215 = sbr.rel (%p1213) target = $region64
        $region63: #{tpu_custom_call.1} parent=47 // pred_region
          %s1217 = ssub.s32 128, 128
          %1218 = vsyncadd %s1209, %s1217
          %s1219 = smul.addr %s25, 128
          %s1220 = scalar_lea.hbm %s7, %s1219
          %s1222 = sshll.u32 %s1212, 4
          %s1223 = int_to_ptr.vmem [resolvable:$true] %s1222
          %1225 = dma.vmem_to_hbm [thread:$0]  %s1223, 128, %s1220, %s1209
        $region64: #{tpu_custom_call.1} parent=47 // pred_fallthru
          _
      $region48: #{tpu_custom_call.1} parent=5 // pred_fallthru
        _
      %p1226 = scmp.le.s32.totalorder 2, %s20
      // Predicated region
      $region65: #{tpu_custom_call.1} parent=5 // pred_check
        %p1227 = pneg %p1226
      $region66: #{tpu_custom_call.1} parent=5 // pred_check_branch
        %1229 = sbr.rel (%p1227) target = $region68
      $region67: #{tpu_custom_call.1} parent=5 // pred_region
        %s1230 = ssub.s32 %s20, 2
        // Predicated region
        $region69: #{tpu_custom_call.1} parent=67 // pred_check
          %p1231 = pneg %p201
        $region70: #{tpu_custom_call.1} parent=67 // pred_check_branch
          %1233 = sbr.rel (%p1231) target = $region72
        $region71: #{tpu_custom_call.1} parent=67 // pred_region
          %s1234 = sand.u32 %s186, 1
          %s1235 = scalar_lea.sflag [#allocation4], %s1234
          %s1236 = sand.u32 %s186, 1
          %s1237 = smul.addr %s1236, 8
          %s1238 = scalar_lea.vmem [#allocation8], %s1237
          %1239 = dma.done %s1235, 128
        $region72: #{tpu_custom_call.1} parent=67 // pred_fallthru
          _
      $region68: #{tpu_custom_call.1} parent=5 // pred_fallthru
        _
    $region6: #{tpu_custom_call.1} parent=1 // loop_footer
      %s24 = sadd.s32 1, %s20
    $region7: #{tpu_custom_call.1} parent=1 // loop_footer_branch
      %19 = sbr.rel target = $region3
    $region8: #{tpu_custom_call.1} parent=1 // loop_exit
      _
    %1240 = vsyncpa [#allocation3], 1
    %s1241 = scalar_lea.sflag [#allocation3], 1
    %1242 = vsyncpa %s1241, 1
    %1243 = vsyncpa [#allocation6], 1
    %1244 = vsyncpa [#allocation4], 1
    %s1245 = scalar_lea.sflag [#allocation4], 1
    %1246 = vsyncpa %s1245, 1

</llo_original>
